<compile_context>
chip_gen: v5e
topology: v5e:2x2
jax: 0.10.0
libtpu: 0.0.40
codegen_flags: <defaults>
</compile_context>

<pallas_src>
import functools

import numpy as np
import jax
import jax.numpy as jnp
from jax import lax
from jax.experimental import pallas as pl
from jax.experimental.pallas import tpu as pltpu

GN_EPS = 1e-5
_INV_SQRT2 = 0.7071067811865476


# ---------------------------------- kernel ------------------------------------
def down_kernel(x_ref, emb_ref, masks_ref,
                w1a_ref, w1b_ref, w2a_ref, w2b_ref,
                gn1_ref, gn2_ref, o_ref, *, w2, s2, nb):
    """One grid step processes `nb` samples packed along the lane axis.

    x_ref    : (4, Cin, L)   f32, L = nb*S2; leading dim = 2x2 pooling corner.
    emb_ref  : (Cout, nb)    f32, per-sample time embedding (SiLU+Linear done by XLA).
    masks_ref: (9+nb, L)     f32, rows 0..8 = conv-tap validity masks,
                                  rows 9..  = per-sample lane-membership masks.
    w*_ref   : (Cout, 9*Cin) bf16 stacked conv weights (tap-major rows of Cin).
    gn*_ref  : (C, 4)        f32 packed [gamma_a, beta_a, gamma_b, beta_b].
    o_ref    : (Cout, L)     f32.
    """
    lanes = nb * s2

    # Hoisted once, reused by all 4 convs / 4 GroupNorms.
    tap_masks = [masks_ref[k:k + 1, :] for k in range(9)]          # (1, L) f32
    smasks = [masks_ref[9 + n:10 + n, :] for n in range(nb)]       # (1, L) f32

    def conv3x3(a, w_ref):
        # Roll-based im2col (XLU) + one stacked bf16 MXU matmul, f32 accumulate.
        taps = []
        for k in range(9):
            oy, ox = k // 3 - 1, k % 3 - 1
            off = oy * w2 + ox
            t = a if off == 0 else pltpu.roll(a, shift=(-off) % lanes, axis=1)
            if oy != 0 or ox != 0:
                t = t * tap_masks[k]        # zero the padded / cross-sample lanes
            taps.append(t)
        im2col = jnp.concatenate(taps, axis=0).astype(jnp.bfloat16)   # (9*Cin, L)
        return jnp.dot(w_ref[...], im2col,
                       preferred_element_type=jnp.float32)            # (Cout, L)

    def per_sample_mean_map(v, inv_count):
        # Column-sum once, then masked lane-sums -> per-lane mean map.
        col = jnp.sum(v, axis=0, keepdims=True)                       # (1, L)
        out = jnp.zeros_like(col)
        for m in smasks:
            s = jnp.sum(col * m, axis=1, keepdims=True)               # (1, 1)
            out = out + m * (s * inv_count)
        return out

    def group_norm(v, gn_ref, idx):
        # GroupNorm(1, C): whole-sample mean/var, per-channel affine (all f32).
        inv_count = 1.0 / (v.shape[0] * s2)
        mu = per_sample_mean_map(v, inv_count)
        d = v - mu
        var = per_sample_mean_map(d * d, inv_count)
        gamma = gn_ref[:, 2 * idx:2 * idx + 1]
        beta = gn_ref[:, 2 * idx + 1:2 * idx + 2]
        return d * lax.rsqrt(var + GN_EPS) * gamma + beta

    def gelu(v):  # PyTorch nn.GELU default = exact erf formulation.
        return 0.5 * v * (1.0 + lax.erf(v * _INV_SQRT2))

    # --- MaxPool2d(2): pure VPU max of the 4 pre-split corners (no MXU) --------
    a = jnp.maximum(jnp.maximum(x_ref[0], x_ref[1]),
                    jnp.maximum(x_ref[2], x_ref[3]))                  # (Cin, L)

    # --- DoubleConv(in, in, residual=True): gelu(x + gn(conv(gelu(gn(conv(x)))))) 
    h = conv3x3(a, w1a_ref)
    h = gelu(group_norm(h, gn1_ref, 0))
    h = conv3x3(h, w1b_ref)
    h = group_norm(h, gn1_ref, 1)
    a = gelu(a + h)                                                   # (Cin, L)

    # --- DoubleConv(in, out) ----------------------------------------------------
    y = conv3x3(a, w2a_ref)
    y = gelu(group_norm(y, gn2_ref, 0))
    y = conv3x3(y, w2b_ref)
    y = group_norm(y, gn2_ref, 1)                                     # (Cout, L)

    # --- + time embedding, broadcast per sample along its S2 lanes --------------
    emb = emb_ref[...]                                                # (Cout, nb)
    emb_map = sum(smasks[n] * emb[:, n:n + 1] for n in range(nb))     # (Cout, L)

    o_ref[...] = (y + emb_map).astype(o_ref.dtype)


# ----------------------------- host-side helpers -------------------------------
def _pick_nb(b, s2, target=128):
    """Pack nb samples along lanes so tiles are >= `target` lanes wide."""
    nb = 1
    while nb < b and nb * s2 < target and b % (nb * 2) == 0:
        nb *= 2
    return nb


def _build_masks(h2, w2, nb):
    """(9+nb, nb*S2): rows 0..8 = 3x3 tap validity (zero == conv zero-padding,
    also kills cross-sample roll wrap); rows 9.. = per-sample lane membership."""
    s2 = h2 * w2
    m = np.zeros((9 + nb, nb * s2), np.float32)
    ii, jj = np.meshgrid(np.arange(h2), np.arange(w2), indexing="ij")
    for k in range(9):
        oy, ox = k // 3 - 1, k % 3 - 1
        valid = ((ii + oy >= 0) & (ii + oy < h2) &
                 (jj + ox >= 0) & (jj + ox < w2)).astype(np.float32).reshape(-1)
        m[k] = np.tile(valid, nb)
    for n in range(nb):
        m[9 + n, n * s2:(n + 1) * s2] = 1.0
    return jnp.asarray(m)


def _prep_conv_weight(wc):
    """PyTorch Conv2d weight (Cout, Cin, 3, 3) -> (Cout, 9*Cin) bf16,
    column order (tap k = 3*ky+kx)-major then Cin, matching the im2col stack."""
    cout, cin, kh, kw = wc.shape
    return jnp.transpose(wc, (0, 2, 3, 1)).reshape(cout, kh * kw * cin).astype(jnp.bfloat16)


def _pack_input(x, nb):
    """(B, Cin, H, W) -> (B//nb, 4, Cin, nb*S2): corner-major, samples along lanes."""
    b, cin, h, w = x.shape
    h2, w2 = h // 2, w // 2
    x6 = x.reshape(b // nb, nb, cin, h2, 2, w2, 2)
    x7 = jnp.transpose(x6, (0, 4, 6, 2, 1, 3, 5))     # (g, dy, dx, c, n, i, j)
    return x7.reshape(b // nb, 4, cin, nb * h2 * w2)


# --------------------------------- wrapper -------------------------------------
def _down_forward(x, t, params):
    """x: (B, Cin, H, W) f32, t: (B, emb_dim) f32 -> (B, Cout, H//2, W//2) f32."""
    b, cin, h, w = x.shape
    assert h % 2 == 0 and w % 2 == 0, "MaxPool2d(2) needs even H, W"
    h2, w2 = h // 2, w // 2
    s2 = h2 * w2
    cout = params["w2b"].shape[0]

    nb = _pick_nb(b, s2)
    lanes = nb * s2

    # Input layout plumbing (XLA): pooling corners + lane-packed samples.
    xin = _pack_input(x, nb)                               # (B/nb, 4, Cin, L)

    # Time-embedding branch (SiLU -> Linear) done by XLA, fed per grid step.
    sil = t * jax.nn.sigmoid(t)
    emb = (jnp.dot(sil, params["we"].T, precision=lax.Precision.HIGHEST)
           + params["be"])                                 # (B, Cout)
    emb = jnp.transpose(emb.reshape(b // nb, nb, cout), (0, 2, 1))   # (B/nb, Cout, nb)

    masks = _build_masks(h2, w2, nb)                       # (9+nb, L) f32
    gn1 = jnp.stack([params["g1a"], params["b1a"],
                     params["g1b"], params["b1b"]], axis=1)           # (Cin, 4)
    gn2 = jnp.stack([params["g2a"], params["b2a"],
                     params["g2b"], params["b2b"]], axis=1)           # (Cout, 4)

    consts = (masks,
              _prep_conv_weight(params["w1a"]), _prep_conv_weight(params["w1b"]),
              _prep_conv_weight(params["w2a"]), _prep_conv_weight(params["w2b"]),
              gn1, gn2)

    def const_spec(a):
        # Constant index_map: Pallas DMAs these once; no per-step re-fetch.
        return pl.BlockSpec(a.shape, lambda g, _nd=a.ndim: (0,) * _nd)

    kernel = functools.partial(down_kernel, w2=w2, s2=s2, nb=nb)

    flops = 2 * b * s2 * 9 * (cin * cin + cin * cin + cin * cout + cout * cout)
    transcendentals = b * s2 * (2 * cin + cout)
    bytes_accessed = (xin.size + b * cout * s2 + emb.size) * 4 \
        + sum(int(np.prod(c.shape)) * c.dtype.itemsize for c in consts)

    out = pl.pallas_call(
        kernel,
        out_shape=jax.ShapeDtypeStruct((b // nb, cout, lanes), jnp.float32),
        grid_spec=pltpu.PrefetchScalarGridSpec(
            num_scalar_prefetch=0,
            grid=(b // nb,),
            in_specs=[pl.BlockSpec((pl.Squeezed(), 4, cin, lanes),
                                   lambda g: (g, 0, 0, 0)),
                      pl.BlockSpec((pl.Squeezed(), cout, nb),
                                   lambda g: (g, 0, 0))]
                     + [const_spec(a) for a in consts],
            out_specs=pl.BlockSpec((pl.Squeezed(), cout, lanes),
                                   lambda g: (g, 0, 0)),
        ),
        compiler_params=pltpu.CompilerParams(
            dimension_semantics=("parallel",)),
        cost_estimate=pl.CostEstimate(flops=flops,
                                      transcendentals=transcendentals,
                                      bytes_accessed=bytes_accessed),
    )(xin, emb, *consts)

    # Output layout plumbing back to NCHW.
    out = out.reshape(b // nb, cout, nb, h2, w2)
    out = jnp.transpose(out, (0, 2, 1, 3, 4)).reshape(b, cout, h2, w2)
    return out


down_forward = jax.jit(_down_forward)


# ------------------------------ params & reference ------------------------------
def init_params(key, cin, cout, emb_dim):
    ks = jax.random.split(key, 10)
    wconv = lambda k, co, ci: (0.05 * jax.random.normal(k, (co, ci, 3, 3))).astype(jnp.float32)
    return {
        # DoubleConv(cin, cin, residual=True)   (mid = cin)
        "w1a": wconv(ks[0], cin, cin),
        "g1a": (1.0 + 0.1 * jax.random.normal(ks[1], (cin,))).astype(jnp.float32),
        "b1a": (0.1 * jax.random.normal(ks[2], (cin,))).astype(jnp.float32),
        "w1b": wconv(ks[3], cin, cin),
        "g1b": jnp.ones((cin,), jnp.float32),
        "b1b": jnp.zeros((cin,), jnp.float32),
        # DoubleConv(cin, cout)                 (mid = cout)
        "w2a": wconv(ks[4], cout, cin),
        "g2a": (1.0 + 0.1 * jax.random.normal(ks[5], (cout,))).astype(jnp.float32),
        "b2a": (0.1 * jax.random.normal(ks[6], (cout,))).astype(jnp.float32),
        "w2b": wconv(ks[7], cout, cout),
        "g2b": jnp.ones((cout,), jnp.float32),
        "b2b": jnp.zeros((cout,), jnp.float32),
        # emb_layer: SiLU -> Linear(emb_dim, cout)
        "we": (0.05 * jax.random.normal(ks[8], (cout, emb_dim))).astype(jnp.float32),
        "be": (0.05 * jax.random.normal(ks[9], (cout,))).astype(jnp.float32),
    }


def ref_forward(x, t, p):
    """Pure-JAX (XLA, f32 HIGHEST precision) reference of PyTorch Down.forward."""
    hp = lax.reduce_window(x, -jnp.inf, lax.max, (1, 1, 2, 2), (1, 1, 2, 2), "VALID")

    def conv(h, w):
        return lax.conv_general_dilated(
            h, w, window_strides=(1, 1), padding=((1, 1), (1, 1)),
            dimension_numbers=("NCHW", "OIHW", "NCHW"),
            precision=lax.Precision.HIGHEST)

    def gn(h, g, b):
        mu = h.mean(axis=(1, 2, 3), keepdims=True)
        var = ((h - mu) ** 2).mean(axis=(1, 2, 3), keepdims=True)
        return (h - mu) / jnp.sqrt(var + GN_EPS) * g[None, :, None, None] + b[None, :, None, None]

    def gelu(h):
        return 0.5 * h * (1.0 + lax.erf(h * _INV_SQRT2))

    h = conv(hp, p["w1a"]); h = gelu(gn(h, p["g1a"], p["b1a"]))
    h = conv(h, p["w1b"]); h = gn(h, p["g1b"], p["b1b"])
    h = gelu(hp + h)
    y = conv(h, p["w2a"]); y = gelu(gn(y, p["g2a"], p["b2a"]))
    y = conv(y, p["w2b"]); y = gn(y, p["g2b"], p["b2b"])
    sil = t * (1.0 / (1.0 + jnp.exp(-t)))
    emb = jnp.dot(sil, p["we"].T, precision=lax.Precision.HIGHEST) + p["be"]
    return y + emb[:, :, None, None]


if __name__ == "__main__":
    batch, in_ch, out_ch, size, emb_dim = 2, 8, 16, 16, 256
    key = jax.random.PRNGKey(0)
    kx, kt, kp = jax.random.split(key, 3)
    x = jax.random.normal(kx, (batch, in_ch, size, size), jnp.float32)
    t = jax.random.normal(kt, (batch, emb_dim), jnp.float32)
    params = init_params(kp, in_ch, out_ch, emb_dim)

    out = jax.block_until_ready(down_forward(x, t, params))
    ref = jax.block_until_ready(ref_forward(x, t, params))

    assert out.shape == (batch, out_ch, size // 2, size // 2), out.shape
    # Conv matmuls use bf16 MXU operands (f32 accumulation) per the perf review,
    # so tolerance is looser than a pure-f32 comparison would need.
    max_err = float(jnp.max(jnp.abs(out - ref)))
    assert jnp.allclose(out, ref, rtol=5e-2, atol=5e-2), max_err
    print("KERNEL_OK")
</pallas_src>

<mosaic_0001>
module attributes {stable_mosaic.version = 11 : i64} {
  func.func @down_kernel(%arg0: i32, %arg1: memref<1x4x8x128xf32, #tpu.memory_space<vmem>>, %arg2: memref<1x16x2xf32, #tpu.memory_space<vmem>>, %arg3: memref<11x128xf32, #tpu.memory_space<vmem>>, %arg4: memref<8x72xbf16, #tpu.memory_space<vmem>>, %arg5: memref<8x72xbf16, #tpu.memory_space<vmem>>, %arg6: memref<16x72xbf16, #tpu.memory_space<vmem>>, %arg7: memref<16x144xbf16, #tpu.memory_space<vmem>>, %arg8: memref<8x4xf32, #tpu.memory_space<vmem>>, %arg9: memref<16x4xf32, #tpu.memory_space<vmem>>, %arg10: memref<1x16x128xf32, #tpu.memory_space<vmem>>) attributes {dimension_semantics = [#tpu.dimension_semantics<parallel>], iteration_bounds = array<i64: 1>, scalar_prefetch = 0 : i64, scratch_operands = 0 : i64, tpu.core_type = #tpu.core_type<tc>, window_params = [{transform_indices = @transform_0, window_bounds = array<i64: 1, 4, 8, 128>}, {transform_indices = @transform_1, window_bounds = array<i64: 1, 16, 2>}, {pipeline_mode = #tpu.pipeline_mode<synchronous>, transform_indices = @transform_2, window_bounds = array<i64: 11, 128>}, {pipeline_mode = #tpu.pipeline_mode<synchronous>, transform_indices = @transform_3, window_bounds = array<i64: 8, 72>}, {pipeline_mode = #tpu.pipeline_mode<synchronous>, transform_indices = @transform_4, window_bounds = array<i64: 8, 72>}, {pipeline_mode = #tpu.pipeline_mode<synchronous>, transform_indices = @transform_5, window_bounds = array<i64: 16, 72>}, {pipeline_mode = #tpu.pipeline_mode<synchronous>, transform_indices = @transform_6, window_bounds = array<i64: 16, 144>}, {pipeline_mode = #tpu.pipeline_mode<synchronous>, transform_indices = @transform_7, window_bounds = array<i64: 8, 4>}, {pipeline_mode = #tpu.pipeline_mode<synchronous>, transform_indices = @transform_8, window_bounds = array<i64: 16, 4>}, {transform_indices = @transform_9, window_bounds = array<i64: 1, 16, 128>}]} {
    %c0 = arith.constant 0 : index
    %c0_0 = arith.constant 0 : index
    %0 = vector.load %arg3[%c0, %c0_0] : memref<11x128xf32, #tpu.memory_space<vmem>>, vector<1x128xf32>
    %c1 = arith.constant 1 : index
    %c0_1 = arith.constant 0 : index
    %1 = vector.load %arg3[%c1, %c0_1] : memref<11x128xf32, #tpu.memory_space<vmem>>, vector<1x128xf32>
    %c2 = arith.constant 2 : index
    %c0_2 = arith.constant 0 : index
    %2 = vector.load %arg3[%c2, %c0_2] : memref<11x128xf32, #tpu.memory_space<vmem>>, vector<1x128xf32>
    %c3 = arith.constant 3 : index
    %c0_3 = arith.constant 0 : index
    %3 = vector.load %arg3[%c3, %c0_3] : memref<11x128xf32, #tpu.memory_space<vmem>>, vector<1x128xf32>
    %c5 = arith.constant 5 : index
    %c0_4 = arith.constant 0 : index
    %4 = vector.load %arg3[%c5, %c0_4] : memref<11x128xf32, #tpu.memory_space<vmem>>, vector<1x128xf32>
    %c6 = arith.constant 6 : index
    %c0_5 = arith.constant 0 : index
    %5 = vector.load %arg3[%c6, %c0_5] : memref<11x128xf32, #tpu.memory_space<vmem>>, vector<1x128xf32>
    %c7 = arith.constant 7 : index
    %c0_6 = arith.constant 0 : index
    %6 = vector.load %arg3[%c7, %c0_6] : memref<11x128xf32, #tpu.memory_space<vmem>>, vector<1x128xf32>
    %c8 = arith.constant 8 : index
    %c0_7 = arith.constant 0 : index
    %7 = vector.load %arg3[%c8, %c0_7] : memref<11x128xf32, #tpu.memory_space<vmem>>, vector<1x128xf32>
    %c9 = arith.constant 9 : index
    %c0_8 = arith.constant 0 : index
    %8 = vector.load %arg3[%c9, %c0_8] : memref<11x128xf32, #tpu.memory_space<vmem>>, vector<1x128xf32>
    %c10 = arith.constant 10 : index
    %c0_9 = arith.constant 0 : index
    %9 = vector.load %arg3[%c10, %c0_9] : memref<11x128xf32, #tpu.memory_space<vmem>>, vector<1x128xf32>
    %c0_10 = arith.constant 0 : index
    %c0_11 = arith.constant 0 : index
    %c0_12 = arith.constant 0 : index
    %c0_13 = arith.constant 0 : index
    %10 = vector.load %arg1[%c0_10, %c0_11, %c0_12, %c0_13] : memref<1x4x8x128xf32, #tpu.memory_space<vmem>>, vector<1x1x8x128xf32>
    %11 = vector.shape_cast %10 : vector<1x1x8x128xf32> to vector<8x128xf32>
    %c0_14 = arith.constant 0 : index
    %c1_15 = arith.constant 1 : index
    %c0_16 = arith.constant 0 : index
    %c0_17 = arith.constant 0 : index
    %12 = vector.load %arg1[%c0_14, %c1_15, %c0_16, %c0_17] : memref<1x4x8x128xf32, #tpu.memory_space<vmem>>, vector<1x1x8x128xf32>
    %13 = vector.shape_cast %12 : vector<1x1x8x128xf32> to vector<8x128xf32>
    %14 = arith.maximumf %11, %13 : vector<8x128xf32>
    %c0_18 = arith.constant 0 : index
    %c2_19 = arith.constant 2 : index
    %c0_20 = arith.constant 0 : index
    %c0_21 = arith.constant 0 : index
    %15 = vector.load %arg1[%c0_18, %c2_19, %c0_20, %c0_21] : memref<1x4x8x128xf32, #tpu.memory_space<vmem>>, vector<1x1x8x128xf32>
    %16 = vector.shape_cast %15 : vector<1x1x8x128xf32> to vector<8x128xf32>
    %c0_22 = arith.constant 0 : index
    %c3_23 = arith.constant 3 : index
    %c0_24 = arith.constant 0 : index
    %c0_25 = arith.constant 0 : index
    %17 = vector.load %arg1[%c0_22, %c3_23, %c0_24, %c0_25] : memref<1x4x8x128xf32, #tpu.memory_space<vmem>>, vector<1x1x8x128xf32>
    %18 = vector.shape_cast %17 : vector<1x1x8x128xf32> to vector<8x128xf32>
    %19 = arith.maximumf %16, %18 : vector<8x128xf32>
    %20 = arith.maximumf %14, %19 : vector<8x128xf32>
    %c9_i32 = arith.constant 9 : i32
    %21 = tpu.dynamic_rotate %20 by %c9_i32 dim 1 : vector<8x128xf32>, i32 -> vector<8x128xf32>
    %22 = vector.broadcast %0 : vector<1x128xf32> to vector<8x128xf32>
    %23 = arith.mulf %21, %22 : vector<8x128xf32>
    %c8_i32 = arith.constant 8 : i32
    %24 = tpu.dynamic_rotate %20 by %c8_i32 dim 1 : vector<8x128xf32>, i32 -> vector<8x128xf32>
    %25 = vector.broadcast %1 : vector<1x128xf32> to vector<8x128xf32>
    %26 = arith.mulf %24, %25 : vector<8x128xf32>
    %c7_i32 = arith.constant 7 : i32
    %27 = tpu.dynamic_rotate %20 by %c7_i32 dim 1 : vector<8x128xf32>, i32 -> vector<8x128xf32>
    %28 = vector.broadcast %2 : vector<1x128xf32> to vector<8x128xf32>
    %29 = arith.mulf %27, %28 : vector<8x128xf32>
    %c1_i32 = arith.constant 1 : i32
    %30 = tpu.dynamic_rotate %20 by %c1_i32 dim 1 : vector<8x128xf32>, i32 -> vector<8x128xf32>
    %31 = vector.broadcast %3 : vector<1x128xf32> to vector<8x128xf32>
    %32 = arith.mulf %30, %31 : vector<8x128xf32>
    %c127_i32 = arith.constant 127 : i32
    %33 = tpu.dynamic_rotate %20 by %c127_i32 dim 1 : vector<8x128xf32>, i32 -> vector<8x128xf32>
    %34 = vector.broadcast %4 : vector<1x128xf32> to vector<8x128xf32>
    %35 = arith.mulf %33, %34 : vector<8x128xf32>
    %c121_i32 = arith.constant 121 : i32
    %36 = tpu.dynamic_rotate %20 by %c121_i32 dim 1 : vector<8x128xf32>, i32 -> vector<8x128xf32>
    %37 = vector.broadcast %5 : vector<1x128xf32> to vector<8x128xf32>
    %38 = arith.mulf %36, %37 : vector<8x128xf32>
    %c120_i32 = arith.constant 120 : i32
    %39 = tpu.dynamic_rotate %20 by %c120_i32 dim 1 : vector<8x128xf32>, i32 -> vector<8x128xf32>
    %40 = vector.broadcast %6 : vector<1x128xf32> to vector<8x128xf32>
    %41 = arith.mulf %39, %40 : vector<8x128xf32>
    %c119_i32 = arith.constant 119 : i32
    %42 = tpu.dynamic_rotate %20 by %c119_i32 dim 1 : vector<8x128xf32>, i32 -> vector<8x128xf32>
    %43 = vector.broadcast %7 : vector<1x128xf32> to vector<8x128xf32>
    %44 = arith.mulf %42, %43 : vector<8x128xf32>
    %45 = tpu.concatenate %23, %26, %29, %32, %20, %35, %38, %41, %44 in 0 : vector<8x128xf32>, vector<8x128xf32>, vector<8x128xf32>, vector<8x128xf32>, vector<8x128xf32>, vector<8x128xf32>, vector<8x128xf32>, vector<8x128xf32>, vector<8x128xf32> -> vector<72x128xf32>
    %46 = arith.truncf %45 : vector<72x128xf32> to vector<72x128xbf16>
    %c0_26 = arith.constant 0 : index
    %c0_27 = arith.constant 0 : index
    %47 = vector.load %arg4[%c0_26, %c0_27] : memref<8x72xbf16, #tpu.memory_space<vmem>>, vector<8x72xbf16>
    %cst = arith.constant dense<0.000000e+00> : vector<8x128xf32>
    %48 = tpu.matmul %47, %46, %cst {dimension_numbers = #tpu.dot_dimension_numbers<[1], [0], [0], [1], [0, 0, 1, 1], [], []>} : vector<8x72xbf16>, vector<72x128xbf16>, vector<8x128xf32> -> vector<8x128xf32>
    %cst_28 = arith.constant dense<0.000000e+00> : vector<128xf32>
    %49 = vector.multi_reduction <add>, %48, %cst_28 [0] : vector<8x128xf32> to vector<128xf32>
    %50 = vector.shape_cast %49 : vector<128xf32> to vector<1x128xf32>
    %cst_29 = arith.constant 0.000000e+00 : f32
    %51 = vector.broadcast %cst_29 : f32 to vector<1x128xf32>
    %52 = arith.mulf %50, %8 : vector<1x128xf32>
    %cst_30 = arith.constant dense<0.000000e+00> : vector<1xf32>
    %53 = vector.multi_reduction <add>, %52, %cst_30 [1] : vector<1x128xf32> to vector<1xf32>
    %54 = vector.shape_cast %53 : vector<1xf32> to vector<1x1xf32>
    %cst_31 = arith.constant 0.001953125 : f32
    %55 = vector.broadcast %cst_31 : f32 to vector<1x1xf32>
    %56 = arith.mulf %54, %55 : vector<1x1xf32>
    %57 = vector.broadcast %56 : vector<1x1xf32> to vector<1x128xf32>
    %58 = arith.mulf %8, %57 : vector<1x128xf32>
    %59 = arith.addf %51, %58 : vector<1x128xf32>
    %60 = arith.mulf %50, %9 : vector<1x128xf32>
    %cst_32 = arith.constant dense<0.000000e+00> : vector<1xf32>
    %61 = vector.multi_reduction <add>, %60, %cst_32 [1] : vector<1x128xf32> to vector<1xf32>
    %62 = vector.shape_cast %61 : vector<1xf32> to vector<1x1xf32>
    %cst_33 = arith.constant 0.001953125 : f32
    %63 = vector.broadcast %cst_33 : f32 to vector<1x1xf32>
    %64 = arith.mulf %62, %63 : vector<1x1xf32>
    %65 = vector.broadcast %64 : vector<1x1xf32> to vector<1x128xf32>
    %66 = arith.mulf %9, %65 : vector<1x128xf32>
    %67 = arith.addf %59, %66 : vector<1x128xf32>
    %68 = vector.broadcast %67 : vector<1x128xf32> to vector<8x128xf32>
    %69 = arith.subf %48, %68 : vector<8x128xf32>
    %70 = arith.mulf %69, %69 : vector<8x128xf32>
    %cst_34 = arith.constant dense<0.000000e+00> : vector<128xf32>
    %71 = vector.multi_reduction <add>, %70, %cst_34 [0] : vector<8x128xf32> to vector<128xf32>
    %72 = vector.shape_cast %71 : vector<128xf32> to vector<1x128xf32>
    %cst_35 = arith.constant 0.000000e+00 : f32
    %73 = vector.broadcast %cst_35 : f32 to vector<1x128xf32>
    %74 = arith.mulf %72, %8 : vector<1x128xf32>
    %cst_36 = arith.constant dense<0.000000e+00> : vector<1xf32>
    %75 = vector.multi_reduction <add>, %74, %cst_36 [1] : vector<1x128xf32> to vector<1xf32>
    %76 = vector.shape_cast %75 : vector<1xf32> to vector<1x1xf32>
    %cst_37 = arith.constant 0.001953125 : f32
    %77 = vector.broadcast %cst_37 : f32 to vector<1x1xf32>
    %78 = arith.mulf %76, %77 : vector<1x1xf32>
    %79 = vector.broadcast %78 : vector<1x1xf32> to vector<1x128xf32>
    %80 = arith.mulf %8, %79 : vector<1x128xf32>
    %81 = arith.addf %73, %80 : vector<1x128xf32>
    %82 = arith.mulf %72, %9 : vector<1x128xf32>
    %cst_38 = arith.constant dense<0.000000e+00> : vector<1xf32>
    %83 = vector.multi_reduction <add>, %82, %cst_38 [1] : vector<1x128xf32> to vector<1xf32>
    %84 = vector.shape_cast %83 : vector<1xf32> to vector<1x1xf32>
    %cst_39 = arith.constant 0.001953125 : f32
    %85 = vector.broadcast %cst_39 : f32 to vector<1x1xf32>
    %86 = arith.mulf %84, %85 : vector<1x1xf32>
    %87 = vector.broadcast %86 : vector<1x1xf32> to vector<1x128xf32>
    %88 = arith.mulf %9, %87 : vector<1x128xf32>
    %89 = arith.addf %81, %88 : vector<1x128xf32>
    %c0_40 = arith.constant 0 : index
    %c0_41 = arith.constant 0 : index
    %90 = vector.load %arg8[%c0_40, %c0_41] : memref<8x4xf32, #tpu.memory_space<vmem>>, vector<8x1xf32>
    %c0_42 = arith.constant 0 : index
    %c1_43 = arith.constant 1 : index
    %91 = vector.load %arg8[%c0_42, %c1_43] : memref<8x4xf32, #tpu.memory_space<vmem>>, vector<8x1xf32>
    %cst_44 = arith.constant 9.99999974E-6 : f32
    %92 = vector.broadcast %cst_44 : f32 to vector<1x128xf32>
    %93 = arith.addf %89, %92 : vector<1x128xf32>
    %94 = math.rsqrt %93 : vector<1x128xf32>
    %95 = vector.broadcast %94 : vector<1x128xf32> to vector<8x128xf32>
    %96 = arith.mulf %69, %95 : vector<8x128xf32>
    %97 = vector.broadcast %90 : vector<8x1xf32> to vector<8x128xf32>
    %98 = arith.mulf %96, %97 : vector<8x128xf32>
    %99 = vector.broadcast %91 : vector<8x1xf32> to vector<8x128xf32>
    %100 = arith.addf %98, %99 : vector<8x128xf32>
    %cst_45 = arith.constant 5.000000e-01 : f32
    %101 = vector.broadcast %cst_45 : f32 to vector<8x128xf32>
    %102 = arith.mulf %101, %100 : vector<8x128xf32>
    %cst_46 = arith.constant 0.707106769 : f32
    %103 = vector.broadcast %cst_46 : f32 to vector<8x128xf32>
    %104 = arith.mulf %100, %103 : vector<8x128xf32>
    %105 = math.erf %104 : vector<8x128xf32>
    %cst_47 = arith.constant 1.000000e+00 : f32
    %106 = vector.broadcast %cst_47 : f32 to vector<8x128xf32>
    %107 = arith.addf %106, %105 : vector<8x128xf32>
    %108 = arith.mulf %102, %107 : vector<8x128xf32>
    %c9_i32_48 = arith.constant 9 : i32
    %109 = tpu.dynamic_rotate %108 by %c9_i32_48 dim 1 : vector<8x128xf32>, i32 -> vector<8x128xf32>
    %110 = vector.broadcast %0 : vector<1x128xf32> to vector<8x128xf32>
    %111 = arith.mulf %109, %110 : vector<8x128xf32>
    %c8_i32_49 = arith.constant 8 : i32
    %112 = tpu.dynamic_rotate %108 by %c8_i32_49 dim 1 : vector<8x128xf32>, i32 -> vector<8x128xf32>
    %113 = vector.broadcast %1 : vector<1x128xf32> to vector<8x128xf32>
    %114 = arith.mulf %112, %113 : vector<8x128xf32>
    %c7_i32_50 = arith.constant 7 : i32
    %115 = tpu.dynamic_rotate %108 by %c7_i32_50 dim 1 : vector<8x128xf32>, i32 -> vector<8x128xf32>
    %116 = vector.broadcast %2 : vector<1x128xf32> to vector<8x128xf32>
    %117 = arith.mulf %115, %116 : vector<8x128xf32>
    %c1_i32_51 = arith.constant 1 : i32
    %118 = tpu.dynamic_rotate %108 by %c1_i32_51 dim 1 : vector<8x128xf32>, i32 -> vector<8x128xf32>
    %119 = vector.broadcast %3 : vector<1x128xf32> to vector<8x128xf32>
    %120 = arith.mulf %118, %119 : vector<8x128xf32>
    %c127_i32_52 = arith.constant 127 : i32
    %121 = tpu.dynamic_rotate %108 by %c127_i32_52 dim 1 : vector<8x128xf32>, i32 -> vector<8x128xf32>
    %122 = vector.broadcast %4 : vector<1x128xf32> to vector<8x128xf32>
    %123 = arith.mulf %121, %122 : vector<8x128xf32>
    %c121_i32_53 = arith.constant 121 : i32
    %124 = tpu.dynamic_rotate %108 by %c121_i32_53 dim 1 : vector<8x128xf32>, i32 -> vector<8x128xf32>
    %125 = vector.broadcast %5 : vector<1x128xf32> to vector<8x128xf32>
    %126 = arith.mulf %124, %125 : vector<8x128xf32>
    %c120_i32_54 = arith.constant 120 : i32
    %127 = tpu.dynamic_rotate %108 by %c120_i32_54 dim 1 : vector<8x128xf32>, i32 -> vector<8x128xf32>
    %128 = vector.broadcast %6 : vector<1x128xf32> to vector<8x128xf32>
    %129 = arith.mulf %127, %128 : vector<8x128xf32>
    %c119_i32_55 = arith.constant 119 : i32
    %130 = tpu.dynamic_rotate %108 by %c119_i32_55 dim 1 : vector<8x128xf32>, i32 -> vector<8x128xf32>
    %131 = vector.broadcast %7 : vector<1x128xf32> to vector<8x128xf32>
    %132 = arith.mulf %130, %131 : vector<8x128xf32>
    %133 = tpu.concatenate %111, %114, %117, %120, %108, %123, %126, %129, %132 in 0 : vector<8x128xf32>, vector<8x128xf32>, vector<8x128xf32>, vector<8x128xf32>, vector<8x128xf32>, vector<8x128xf32>, vector<8x128xf32>, vector<8x128xf32>, vector<8x128xf32> -> vector<72x128xf32>
    %134 = arith.truncf %133 : vector<72x128xf32> to vector<72x128xbf16>
    %c0_56 = arith.constant 0 : index
    %c0_57 = arith.constant 0 : index
    %135 = vector.load %arg5[%c0_56, %c0_57] : memref<8x72xbf16, #tpu.memory_space<vmem>>, vector<8x72xbf16>
    %cst_58 = arith.constant dense<0.000000e+00> : vector<8x128xf32>
    %136 = tpu.matmul %135, %134, %cst_58 {dimension_numbers = #tpu.dot_dimension_numbers<[1], [0], [0], [1], [0, 0, 1, 1], [], []>} : vector<8x72xbf16>, vector<72x128xbf16>, vector<8x128xf32> -> vector<8x128xf32>
    %cst_59 = arith.constant dense<0.000000e+00> : vector<128xf32>
    %137 = vector.multi_reduction <add>, %136, %cst_59 [0] : vector<8x128xf32> to vector<128xf32>
    %138 = vector.shape_cast %137 : vector<128xf32> to vector<1x128xf32>
    %cst_60 = arith.constant 0.000000e+00 : f32
    %139 = vector.broadcast %cst_60 : f32 to vector<1x128xf32>
    %140 = arith.mulf %138, %8 : vector<1x128xf32>
    %cst_61 = arith.constant dense<0.000000e+00> : vector<1xf32>
    %141 = vector.multi_reduction <add>, %140, %cst_61 [1] : vector<1x128xf32> to vector<1xf32>
    %142 = vector.shape_cast %141 : vector<1xf32> to vector<1x1xf32>
    %cst_62 = arith.constant 0.001953125 : f32
    %143 = vector.broadcast %cst_62 : f32 to vector<1x1xf32>
    %144 = arith.mulf %142, %143 : vector<1x1xf32>
    %145 = vector.broadcast %144 : vector<1x1xf32> to vector<1x128xf32>
    %146 = arith.mulf %8, %145 : vector<1x128xf32>
    %147 = arith.addf %139, %146 : vector<1x128xf32>
    %148 = arith.mulf %138, %9 : vector<1x128xf32>
    %cst_63 = arith.constant dense<0.000000e+00> : vector<1xf32>
    %149 = vector.multi_reduction <add>, %148, %cst_63 [1] : vector<1x128xf32> to vector<1xf32>
    %150 = vector.shape_cast %149 : vector<1xf32> to vector<1x1xf32>
    %cst_64 = arith.constant 0.001953125 : f32
    %151 = vector.broadcast %cst_64 : f32 to vector<1x1xf32>
    %152 = arith.mulf %150, %151 : vector<1x1xf32>
    %153 = vector.broadcast %152 : vector<1x1xf32> to vector<1x128xf32>
    %154 = arith.mulf %9, %153 : vector<1x128xf32>
    %155 = arith.addf %147, %154 : vector<1x128xf32>
    %156 = vector.broadcast %155 : vector<1x128xf32> to vector<8x128xf32>
    %157 = arith.subf %136, %156 : vector<8x128xf32>
    %158 = arith.mulf %157, %157 : vector<8x128xf32>
    %cst_65 = arith.constant dense<0.000000e+00> : vector<128xf32>
    %159 = vector.multi_reduction <add>, %158, %cst_65 [0] : vector<8x128xf32> to vector<128xf32>
    %160 = vector.shape_cast %159 : vector<128xf32> to vector<1x128xf32>
    %cst_66 = arith.constant 0.000000e+00 : f32
    %161 = vector.broadcast %cst_66 : f32 to vector<1x128xf32>
    %162 = arith.mulf %160, %8 : vector<1x128xf32>
    %cst_67 = arith.constant dense<0.000000e+00> : vector<1xf32>
    %163 = vector.multi_reduction <add>, %162, %cst_67 [1] : vector<1x128xf32> to vector<1xf32>
    %164 = vector.shape_cast %163 : vector<1xf32> to vector<1x1xf32>
    %cst_68 = arith.constant 0.001953125 : f32
    %165 = vector.broadcast %cst_68 : f32 to vector<1x1xf32>
    %166 = arith.mulf %164, %165 : vector<1x1xf32>
    %167 = vector.broadcast %166 : vector<1x1xf32> to vector<1x128xf32>
    %168 = arith.mulf %8, %167 : vector<1x128xf32>
    %169 = arith.addf %161, %168 : vector<1x128xf32>
    %170 = arith.mulf %160, %9 : vector<1x128xf32>
    %cst_69 = arith.constant dense<0.000000e+00> : vector<1xf32>
    %171 = vector.multi_reduction <add>, %170, %cst_69 [1] : vector<1x128xf32> to vector<1xf32>
    %172 = vector.shape_cast %171 : vector<1xf32> to vector<1x1xf32>
    %cst_70 = arith.constant 0.001953125 : f32
    %173 = vector.broadcast %cst_70 : f32 to vector<1x1xf32>
    %174 = arith.mulf %172, %173 : vector<1x1xf32>
    %175 = vector.broadcast %174 : vector<1x1xf32> to vector<1x128xf32>
    %176 = arith.mulf %9, %175 : vector<1x128xf32>
    %177 = arith.addf %169, %176 : vector<1x128xf32>
    %c0_71 = arith.constant 0 : index
    %c2_72 = arith.constant 2 : index
    %178 = vector.load %arg8[%c0_71, %c2_72] : memref<8x4xf32, #tpu.memory_space<vmem>>, vector<8x1xf32>
    %c0_73 = arith.constant 0 : index
    %c3_74 = arith.constant 3 : index
    %179 = vector.load %arg8[%c0_73, %c3_74] : memref<8x4xf32, #tpu.memory_space<vmem>>, vector<8x1xf32>
    %cst_75 = arith.constant 9.99999974E-6 : f32
    %180 = vector.broadcast %cst_75 : f32 to vector<1x128xf32>
    %181 = arith.addf %177, %180 : vector<1x128xf32>
    %182 = math.rsqrt %181 : vector<1x128xf32>
    %183 = vector.broadcast %182 : vector<1x128xf32> to vector<8x128xf32>
    %184 = arith.mulf %157, %183 : vector<8x128xf32>
    %185 = vector.broadcast %178 : vector<8x1xf32> to vector<8x128xf32>
    %186 = arith.mulf %184, %185 : vector<8x128xf32>
    %187 = vector.broadcast %179 : vector<8x1xf32> to vector<8x128xf32>
    %188 = arith.addf %186, %187 : vector<8x128xf32>
    %189 = arith.addf %20, %188 : vector<8x128xf32>
    %cst_76 = arith.constant 5.000000e-01 : f32
    %190 = vector.broadcast %cst_76 : f32 to vector<8x128xf32>
    %191 = arith.mulf %190, %189 : vector<8x128xf32>
    %cst_77 = arith.constant 0.707106769 : f32
    %192 = vector.broadcast %cst_77 : f32 to vector<8x128xf32>
    %193 = arith.mulf %189, %192 : vector<8x128xf32>
    %194 = math.erf %193 : vector<8x128xf32>
    %cst_78 = arith.constant 1.000000e+00 : f32
    %195 = vector.broadcast %cst_78 : f32 to vector<8x128xf32>
    %196 = arith.addf %195, %194 : vector<8x128xf32>
    %197 = arith.mulf %191, %196 : vector<8x128xf32>
    %c9_i32_79 = arith.constant 9 : i32
    %198 = tpu.dynamic_rotate %197 by %c9_i32_79 dim 1 : vector<8x128xf32>, i32 -> vector<8x128xf32>
    %199 = vector.broadcast %0 : vector<1x128xf32> to vector<8x128xf32>
    %200 = arith.mulf %198, %199 : vector<8x128xf32>
    %c8_i32_80 = arith.constant 8 : i32
    %201 = tpu.dynamic_rotate %197 by %c8_i32_80 dim 1 : vector<8x128xf32>, i32 -> vector<8x128xf32>
    %202 = vector.broadcast %1 : vector<1x128xf32> to vector<8x128xf32>
    %203 = arith.mulf %201, %202 : vector<8x128xf32>
    %c7_i32_81 = arith.constant 7 : i32
    %204 = tpu.dynamic_rotate %197 by %c7_i32_81 dim 1 : vector<8x128xf32>, i32 -> vector<8x128xf32>
    %205 = vector.broadcast %2 : vector<1x128xf32> to vector<8x128xf32>
    %206 = arith.mulf %204, %205 : vector<8x128xf32>
    %c1_i32_82 = arith.constant 1 : i32
    %207 = tpu.dynamic_rotate %197 by %c1_i32_82 dim 1 : vector<8x128xf32>, i32 -> vector<8x128xf32>
    %208 = vector.broadcast %3 : vector<1x128xf32> to vector<8x128xf32>
    %209 = arith.mulf %207, %208 : vector<8x128xf32>
    %c127_i32_83 = arith.constant 127 : i32
    %210 = tpu.dynamic_rotate %197 by %c127_i32_83 dim 1 : vector<8x128xf32>, i32 -> vector<8x128xf32>
    %211 = vector.broadcast %4 : vector<1x128xf32> to vector<8x128xf32>
    %212 = arith.mulf %210, %211 : vector<8x128xf32>
    %c121_i32_84 = arith.constant 121 : i32
    %213 = tpu.dynamic_rotate %197 by %c121_i32_84 dim 1 : vector<8x128xf32>, i32 -> vector<8x128xf32>
    %214 = vector.broadcast %5 : vector<1x128xf32> to vector<8x128xf32>
    %215 = arith.mulf %213, %214 : vector<8x128xf32>
    %c120_i32_85 = arith.constant 120 : i32
    %216 = tpu.dynamic_rotate %197 by %c120_i32_85 dim 1 : vector<8x128xf32>, i32 -> vector<8x128xf32>
    %217 = vector.broadcast %6 : vector<1x128xf32> to vector<8x128xf32>
    %218 = arith.mulf %216, %217 : vector<8x128xf32>
    %c119_i32_86 = arith.constant 119 : i32
    %219 = tpu.dynamic_rotate %197 by %c119_i32_86 dim 1 : vector<8x128xf32>, i32 -> vector<8x128xf32>
    %220 = vector.broadcast %7 : vector<1x128xf32> to vector<8x128xf32>
    %221 = arith.mulf %219, %220 : vector<8x128xf32>
    %222 = tpu.concatenate %200, %203, %206, %209, %197, %212, %215, %218, %221 in 0 : vector<8x128xf32>, vector<8x128xf32>, vector<8x128xf32>, vector<8x128xf32>, vector<8x128xf32>, vector<8x128xf32>, vector<8x128xf32>, vector<8x128xf32>, vector<8x128xf32> -> vector<72x128xf32>
    %223 = arith.truncf %222 : vector<72x128xf32> to vector<72x128xbf16>
    %c0_87 = arith.constant 0 : index
    %c0_88 = arith.constant 0 : index
    %224 = vector.load %arg6[%c0_87, %c0_88] : memref<16x72xbf16, #tpu.memory_space<vmem>>, vector<16x72xbf16>
    %cst_89 = arith.constant dense<0.000000e+00> : vector<16x128xf32>
    %225 = tpu.matmul %224, %223, %cst_89 {dimension_numbers = #tpu.dot_dimension_numbers<[1], [0], [0], [1], [0, 0, 1, 1], [], []>} : vector<16x72xbf16>, vector<72x128xbf16>, vector<16x128xf32> -> vector<16x128xf32>
    %cst_90 = arith.constant dense<0.000000e+00> : vector<128xf32>
    %226 = vector.multi_reduction <add>, %225, %cst_90 [0] : vector<16x128xf32> to vector<128xf32>
    %227 = vector.shape_cast %226 : vector<128xf32> to vector<1x128xf32>
    %cst_91 = arith.constant 0.000000e+00 : f32
    %228 = vector.broadcast %cst_91 : f32 to vector<1x128xf32>
    %229 = arith.mulf %227, %8 : vector<1x128xf32>
    %cst_92 = arith.constant dense<0.000000e+00> : vector<1xf32>
    %230 = vector.multi_reduction <add>, %229, %cst_92 [1] : vector<1x128xf32> to vector<1xf32>
    %231 = vector.shape_cast %230 : vector<1xf32> to vector<1x1xf32>
    %cst_93 = arith.constant 9.765625E-4 : f32
    %232 = vector.broadcast %cst_93 : f32 to vector<1x1xf32>
    %233 = arith.mulf %231, %232 : vector<1x1xf32>
    %234 = vector.broadcast %233 : vector<1x1xf32> to vector<1x128xf32>
    %235 = arith.mulf %8, %234 : vector<1x128xf32>
    %236 = arith.addf %228, %235 : vector<1x128xf32>
    %237 = arith.mulf %227, %9 : vector<1x128xf32>
    %cst_94 = arith.constant dense<0.000000e+00> : vector<1xf32>
    %238 = vector.multi_reduction <add>, %237, %cst_94 [1] : vector<1x128xf32> to vector<1xf32>
    %239 = vector.shape_cast %238 : vector<1xf32> to vector<1x1xf32>
    %cst_95 = arith.constant 9.765625E-4 : f32
    %240 = vector.broadcast %cst_95 : f32 to vector<1x1xf32>
    %241 = arith.mulf %239, %240 : vector<1x1xf32>
    %242 = vector.broadcast %241 : vector<1x1xf32> to vector<1x128xf32>
    %243 = arith.mulf %9, %242 : vector<1x128xf32>
    %244 = arith.addf %236, %243 : vector<1x128xf32>
    %245 = vector.broadcast %244 : vector<1x128xf32> to vector<16x128xf32>
    %246 = arith.subf %225, %245 : vector<16x128xf32>
    %247 = arith.mulf %246, %246 : vector<16x128xf32>
    %cst_96 = arith.constant dense<0.000000e+00> : vector<128xf32>
    %248 = vector.multi_reduction <add>, %247, %cst_96 [0] : vector<16x128xf32> to vector<128xf32>
    %249 = vector.shape_cast %248 : vector<128xf32> to vector<1x128xf32>
    %cst_97 = arith.constant 0.000000e+00 : f32
    %250 = vector.broadcast %cst_97 : f32 to vector<1x128xf32>
    %251 = arith.mulf %249, %8 : vector<1x128xf32>
    %cst_98 = arith.constant dense<0.000000e+00> : vector<1xf32>
    %252 = vector.multi_reduction <add>, %251, %cst_98 [1] : vector<1x128xf32> to vector<1xf32>
    %253 = vector.shape_cast %252 : vector<1xf32> to vector<1x1xf32>
    %cst_99 = arith.constant 9.765625E-4 : f32
    %254 = vector.broadcast %cst_99 : f32 to vector<1x1xf32>
    %255 = arith.mulf %253, %254 : vector<1x1xf32>
    %256 = vector.broadcast %255 : vector<1x1xf32> to vector<1x128xf32>
    %257 = arith.mulf %8, %256 : vector<1x128xf32>
    %258 = arith.addf %250, %257 : vector<1x128xf32>
    %259 = arith.mulf %249, %9 : vector<1x128xf32>
    %cst_100 = arith.constant dense<0.000000e+00> : vector<1xf32>
    %260 = vector.multi_reduction <add>, %259, %cst_100 [1] : vector<1x128xf32> to vector<1xf32>
    %261 = vector.shape_cast %260 : vector<1xf32> to vector<1x1xf32>
    %cst_101 = arith.constant 9.765625E-4 : f32
    %262 = vector.broadcast %cst_101 : f32 to vector<1x1xf32>
    %263 = arith.mulf %261, %262 : vector<1x1xf32>
    %264 = vector.broadcast %263 : vector<1x1xf32> to vector<1x128xf32>
    %265 = arith.mulf %9, %264 : vector<1x128xf32>
    %266 = arith.addf %258, %265 : vector<1x128xf32>
    %c0_102 = arith.constant 0 : index
    %c0_103 = arith.constant 0 : index
    %267 = vector.load %arg9[%c0_102, %c0_103] : memref<16x4xf32, #tpu.memory_space<vmem>>, vector<16x1xf32>
    %c0_104 = arith.constant 0 : index
    %c1_105 = arith.constant 1 : index
    %268 = vector.load %arg9[%c0_104, %c1_105] : memref<16x4xf32, #tpu.memory_space<vmem>>, vector<16x1xf32>
    %cst_106 = arith.constant 9.99999974E-6 : f32
    %269 = vector.broadcast %cst_106 : f32 to vector<1x128xf32>
    %270 = arith.addf %266, %269 : vector<1x128xf32>
    %271 = math.rsqrt %270 : vector<1x128xf32>
    %272 = vector.broadcast %271 : vector<1x128xf32> to vector<16x128xf32>
    %273 = arith.mulf %246, %272 : vector<16x128xf32>
    %274 = vector.broadcast %267 : vector<16x1xf32> to vector<16x128xf32>
    %275 = arith.mulf %273, %274 : vector<16x128xf32>
    %276 = vector.broadcast %268 : vector<16x1xf32> to vector<16x128xf32>
    %277 = arith.addf %275, %276 : vector<16x128xf32>
    %cst_107 = arith.constant 5.000000e-01 : f32
    %278 = vector.broadcast %cst_107 : f32 to vector<16x128xf32>
    %279 = arith.mulf %278, %277 : vector<16x128xf32>
    %cst_108 = arith.constant 0.707106769 : f32
    %280 = vector.broadcast %cst_108 : f32 to vector<16x128xf32>
    %281 = arith.mulf %277, %280 : vector<16x128xf32>
    %282 = math.erf %281 : vector<16x128xf32>
    %cst_109 = arith.constant 1.000000e+00 : f32
    %283 = vector.broadcast %cst_109 : f32 to vector<16x128xf32>
    %284 = arith.addf %283, %282 : vector<16x128xf32>
    %285 = arith.mulf %279, %284 : vector<16x128xf32>
    %c9_i32_110 = arith.constant 9 : i32
    %286 = tpu.dynamic_rotate %285 by %c9_i32_110 dim 1 : vector<16x128xf32>, i32 -> vector<16x128xf32>
    %287 = vector.broadcast %0 : vector<1x128xf32> to vector<16x128xf32>
    %288 = arith.mulf %286, %287 : vector<16x128xf32>
    %c8_i32_111 = arith.constant 8 : i32
    %289 = tpu.dynamic_rotate %285 by %c8_i32_111 dim 1 : vector<16x128xf32>, i32 -> vector<16x128xf32>
    %290 = vector.broadcast %1 : vector<1x128xf32> to vector<16x128xf32>
    %291 = arith.mulf %289, %290 : vector<16x128xf32>
    %c7_i32_112 = arith.constant 7 : i32
    %292 = tpu.dynamic_rotate %285 by %c7_i32_112 dim 1 : vector<16x128xf32>, i32 -> vector<16x128xf32>
    %293 = vector.broadcast %2 : vector<1x128xf32> to vector<16x128xf32>
    %294 = arith.mulf %292, %293 : vector<16x128xf32>
    %c1_i32_113 = arith.constant 1 : i32
    %295 = tpu.dynamic_rotate %285 by %c1_i32_113 dim 1 : vector<16x128xf32>, i32 -> vector<16x128xf32>
    %296 = vector.broadcast %3 : vector<1x128xf32> to vector<16x128xf32>
    %297 = arith.mulf %295, %296 : vector<16x128xf32>
    %c127_i32_114 = arith.constant 127 : i32
    %298 = tpu.dynamic_rotate %285 by %c127_i32_114 dim 1 : vector<16x128xf32>, i32 -> vector<16x128xf32>
    %299 = vector.broadcast %4 : vector<1x128xf32> to vector<16x128xf32>
    %300 = arith.mulf %298, %299 : vector<16x128xf32>
    %c121_i32_115 = arith.constant 121 : i32
    %301 = tpu.dynamic_rotate %285 by %c121_i32_115 dim 1 : vector<16x128xf32>, i32 -> vector<16x128xf32>
    %302 = vector.broadcast %5 : vector<1x128xf32> to vector<16x128xf32>
    %303 = arith.mulf %301, %302 : vector<16x128xf32>
    %c120_i32_116 = arith.constant 120 : i32
    %304 = tpu.dynamic_rotate %285 by %c120_i32_116 dim 1 : vector<16x128xf32>, i32 -> vector<16x128xf32>
    %305 = vector.broadcast %6 : vector<1x128xf32> to vector<16x128xf32>
    %306 = arith.mulf %304, %305 : vector<16x128xf32>
    %c119_i32_117 = arith.constant 119 : i32
    %307 = tpu.dynamic_rotate %285 by %c119_i32_117 dim 1 : vector<16x128xf32>, i32 -> vector<16x128xf32>
    %308 = vector.broadcast %7 : vector<1x128xf32> to vector<16x128xf32>
    %309 = arith.mulf %307, %308 : vector<16x128xf32>
    %310 = tpu.concatenate %288, %291, %294, %297, %285, %300, %303, %306, %309 in 0 : vector<16x128xf32>, vector<16x128xf32>, vector<16x128xf32>, vector<16x128xf32>, vector<16x128xf32>, vector<16x128xf32>, vector<16x128xf32>, vector<16x128xf32>, vector<16x128xf32> -> vector<144x128xf32>
    %311 = arith.truncf %310 : vector<144x128xf32> to vector<144x128xbf16>
    %c0_118 = arith.constant 0 : index
    %c0_119 = arith.constant 0 : index
    %312 = vector.load %arg7[%c0_118, %c0_119] : memref<16x144xbf16, #tpu.memory_space<vmem>>, vector<16x144xbf16>
    %cst_120 = arith.constant dense<0.000000e+00> : vector<16x128xf32>
    %313 = tpu.matmul %312, %311, %cst_120 {dimension_numbers = #tpu.dot_dimension_numbers<[1], [0], [0], [1], [0, 0, 1, 1], [], []>} : vector<16x144xbf16>, vector<144x128xbf16>, vector<16x128xf32> -> vector<16x128xf32>
    %cst_121 = arith.constant dense<0.000000e+00> : vector<128xf32>
    %314 = vector.multi_reduction <add>, %313, %cst_121 [0] : vector<16x128xf32> to vector<128xf32>
    %315 = vector.shape_cast %314 : vector<128xf32> to vector<1x128xf32>
    %cst_122 = arith.constant 0.000000e+00 : f32
    %316 = vector.broadcast %cst_122 : f32 to vector<1x128xf32>
    %317 = arith.mulf %315, %8 : vector<1x128xf32>
    %cst_123 = arith.constant dense<0.000000e+00> : vector<1xf32>
    %318 = vector.multi_reduction <add>, %317, %cst_123 [1] : vector<1x128xf32> to vector<1xf32>
    %319 = vector.shape_cast %318 : vector<1xf32> to vector<1x1xf32>
    %cst_124 = arith.constant 9.765625E-4 : f32
    %320 = vector.broadcast %cst_124 : f32 to vector<1x1xf32>
    %321 = arith.mulf %319, %320 : vector<1x1xf32>
    %322 = vector.broadcast %321 : vector<1x1xf32> to vector<1x128xf32>
    %323 = arith.mulf %8, %322 : vector<1x128xf32>
    %324 = arith.addf %316, %323 : vector<1x128xf32>
    %325 = arith.mulf %315, %9 : vector<1x128xf32>
    %cst_125 = arith.constant dense<0.000000e+00> : vector<1xf32>
    %326 = vector.multi_reduction <add>, %325, %cst_125 [1] : vector<1x128xf32> to vector<1xf32>
    %327 = vector.shape_cast %326 : vector<1xf32> to vector<1x1xf32>
    %cst_126 = arith.constant 9.765625E-4 : f32
    %328 = vector.broadcast %cst_126 : f32 to vector<1x1xf32>
    %329 = arith.mulf %327, %328 : vector<1x1xf32>
    %330 = vector.broadcast %329 : vector<1x1xf32> to vector<1x128xf32>
    %331 = arith.mulf %9, %330 : vector<1x128xf32>
    %332 = arith.addf %324, %331 : vector<1x128xf32>
    %333 = vector.broadcast %332 : vector<1x128xf32> to vector<16x128xf32>
    %334 = arith.subf %313, %333 : vector<16x128xf32>
    %335 = arith.mulf %334, %334 : vector<16x128xf32>
    %cst_127 = arith.constant dense<0.000000e+00> : vector<128xf32>
    %336 = vector.multi_reduction <add>, %335, %cst_127 [0] : vector<16x128xf32> to vector<128xf32>
    %337 = vector.shape_cast %336 : vector<128xf32> to vector<1x128xf32>
    %cst_128 = arith.constant 0.000000e+00 : f32
    %338 = vector.broadcast %cst_128 : f32 to vector<1x128xf32>
    %339 = arith.mulf %337, %8 : vector<1x128xf32>
    %cst_129 = arith.constant dense<0.000000e+00> : vector<1xf32>
    %340 = vector.multi_reduction <add>, %339, %cst_129 [1] : vector<1x128xf32> to vector<1xf32>
    %341 = vector.shape_cast %340 : vector<1xf32> to vector<1x1xf32>
    %cst_130 = arith.constant 9.765625E-4 : f32
    %342 = vector.broadcast %cst_130 : f32 to vector<1x1xf32>
    %343 = arith.mulf %341, %342 : vector<1x1xf32>
    %344 = vector.broadcast %343 : vector<1x1xf32> to vector<1x128xf32>
    %345 = arith.mulf %8, %344 : vector<1x128xf32>
    %346 = arith.addf %338, %345 : vector<1x128xf32>
    %347 = arith.mulf %337, %9 : vector<1x128xf32>
    %cst_131 = arith.constant dense<0.000000e+00> : vector<1xf32>
    %348 = vector.multi_reduction <add>, %347, %cst_131 [1] : vector<1x128xf32> to vector<1xf32>
    %349 = vector.shape_cast %348 : vector<1xf32> to vector<1x1xf32>
    %cst_132 = arith.constant 9.765625E-4 : f32
    %350 = vector.broadcast %cst_132 : f32 to vector<1x1xf32>
    %351 = arith.mulf %349, %350 : vector<1x1xf32>
    %352 = vector.broadcast %351 : vector<1x1xf32> to vector<1x128xf32>
    %353 = arith.mulf %9, %352 : vector<1x128xf32>
    %354 = arith.addf %346, %353 : vector<1x128xf32>
    %c0_133 = arith.constant 0 : index
    %c2_134 = arith.constant 2 : index
    %355 = vector.load %arg9[%c0_133, %c2_134] : memref<16x4xf32, #tpu.memory_space<vmem>>, vector<16x1xf32>
    %c0_135 = arith.constant 0 : index
    %c3_136 = arith.constant 3 : index
    %356 = vector.load %arg9[%c0_135, %c3_136] : memref<16x4xf32, #tpu.memory_space<vmem>>, vector<16x1xf32>
    %cst_137 = arith.constant 9.99999974E-6 : f32
    %357 = vector.broadcast %cst_137 : f32 to vector<1x128xf32>
    %358 = arith.addf %354, %357 : vector<1x128xf32>
    %359 = math.rsqrt %358 : vector<1x128xf32>
    %360 = vector.broadcast %359 : vector<1x128xf32> to vector<16x128xf32>
    %361 = arith.mulf %334, %360 : vector<16x128xf32>
    %362 = vector.broadcast %355 : vector<16x1xf32> to vector<16x128xf32>
    %363 = arith.mulf %361, %362 : vector<16x128xf32>
    %364 = vector.broadcast %356 : vector<16x1xf32> to vector<16x128xf32>
    %365 = arith.addf %363, %364 : vector<16x128xf32>
    %c0_138 = arith.constant 0 : index
    %c0_139 = arith.constant 0 : index
    %c0_140 = arith.constant 0 : index
    %366 = vector.load %arg2[%c0_138, %c0_139, %c0_140] : memref<1x16x2xf32, #tpu.memory_space<vmem>>, vector<1x16x2xf32>
    %367 = vector.shape_cast %366 : vector<1x16x2xf32> to vector<16x2xf32>
    %368 = vector.extract_strided_slice %367 {offsets = [0, 0], sizes = [16, 1], strides = [1, 1]} : vector<16x2xf32> to vector<16x1xf32>
    %369 = vector.broadcast %8 : vector<1x128xf32> to vector<16x128xf32>
    %370 = vector.broadcast %368 : vector<16x1xf32> to vector<16x128xf32>
    %371 = arith.mulf %369, %370 : vector<16x128xf32>
    %cst_141 = arith.constant 0.000000e+00 : f32
    %372 = vector.broadcast %cst_141 : f32 to vector<16x128xf32>
    %373 = arith.addf %372, %371 : vector<16x128xf32>
    %374 = vector.extract_strided_slice %367 {offsets = [0, 1], sizes = [16, 1], strides = [1, 1]} : vector<16x2xf32> to vector<16x1xf32>
    %375 = vector.broadcast %9 : vector<1x128xf32> to vector<16x128xf32>
    %376 = vector.broadcast %374 : vector<16x1xf32> to vector<16x128xf32>
    %377 = arith.mulf %375, %376 : vector<16x128xf32>
    %378 = arith.addf %373, %377 : vector<16x128xf32>
    %379 = arith.addf %365, %378 : vector<16x128xf32>
    %c0_142 = arith.constant 0 : index
    %c0_143 = arith.constant 0 : index
    %c0_144 = arith.constant 0 : index
    %380 = vector.load %arg10[%c0_142, %c0_143, %c0_144] : memref<1x16x128xf32, #tpu.memory_space<vmem>>, vector<1x16x128xf32>
    %381 = vector.shape_cast %380 : vector<1x16x128xf32> to vector<16x128xf32>
    %382 = vector.shape_cast %379 : vector<16x128xf32> to vector<1x16x128xf32>
    tpu.vector_store %arg10[%c0_142, %c0_143, %c0_144], %382 {strides = array<i32>} : memref<1x16x128xf32, #tpu.memory_space<vmem>>, vector<1x16x128xf32>,
    return
  }
  func.func @transform_0(%arg0: i32) -> (i32, i32, i32, i32) {
    %c0_i32 = arith.constant 0 : i32
    %c0_i32_0 = arith.constant 0 : i32
    %c0_i32_1 = arith.constant 0 : i32
    %c0_i32_2 = arith.constant 0 : i32
    return %arg0, %c0_i32, %c0_i32_0, %c0_i32_1 : i32, i32, i32, i32
  }
  func.func @transform_1(%arg0: i32) -> (i32, i32, i32) {
    %c0_i32 = arith.constant 0 : i32
    %c0_i32_0 = arith.constant 0 : i32
    %c0_i32_1 = arith.constant 0 : i32
    return %arg0, %c0_i32, %c0_i32_0 : i32, i32, i32
  }
  func.func @transform_2(%arg0: i32) -> (i32, i32) {
    %c0_i32 = arith.constant 0 : i32
    %c0_i32_0 = arith.constant 0 : i32
    %c0_i32_1 = arith.constant 0 : i32
    return %c0_i32, %c0_i32_0 : i32, i32
  }
  func.func @transform_3(%arg0: i32) -> (i32, i32) {
    %c0_i32 = arith.constant 0 : i32
    %c0_i32_0 = arith.constant 0 : i32
    %c0_i32_1 = arith.constant 0 : i32
    return %c0_i32, %c0_i32_0 : i32, i32
  }
  func.func @transform_4(%arg0: i32) -> (i32, i32) {
    %c0_i32 = arith.constant 0 : i32
    %c0_i32_0 = arith.constant 0 : i32
    %c0_i32_1 = arith.constant 0 : i32
    return %c0_i32, %c0_i32_0 : i32, i32
  }
  func.func @transform_5(%arg0: i32) -> (i32, i32) {
    %c0_i32 = arith.constant 0 : i32
    %c0_i32_0 = arith.constant 0 : i32
    %c0_i32_1 = arith.constant 0 : i32
    return %c0_i32, %c0_i32_0 : i32, i32
  }
  func.func @transform_6(%arg0: i32) -> (i32, i32) {
    %c0_i32 = arith.constant 0 : i32
    %c0_i32_0 = arith.constant 0 : i32
    %c0_i32_1 = arith.constant 0 : i32
    return %c0_i32, %c0_i32_0 : i32, i32
  }
  func.func @transform_7(%arg0: i32) -> (i32, i32) {
    %c0_i32 = arith.constant 0 : i32
    %c0_i32_0 = arith.constant 0 : i32
    %c0_i32_1 = arith.constant 0 : i32
    return %c0_i32, %c0_i32_0 : i32, i32
  }
  func.func @transform_8(%arg0: i32) -> (i32, i32) {
    %c0_i32 = arith.constant 0 : i32
    %c0_i32_0 = arith.constant 0 : i32
    %c0_i32_1 = arith.constant 0 : i32
    return %c0_i32, %c0_i32_0 : i32, i32
  }
  func.func @transform_9(%arg0: i32) -> (i32, i32, i32) {
    %c0_i32 = arith.constant 0 : i32
    %c0_i32_0 = arith.constant 0 : i32
    %c0_i32_1 = arith.constant 0 : i32
    return %arg0, %c0_i32, %c0_i32_0 : i32, i32, i32
  }
}

</mosaic_0001>

<llo_original>
// kernel: _down_forward.1
$region0: #{_down_forward.1}
  #allocation0 [shape = 'u32[]', space=smem, size = 0x4, offset = 0x4, fixed_abs, tag = 'smem constant byte address 0x4 - core index']
  #allocation1 [shape = 'u32[72,128]{1,0:T(1,128)}', space=vmem, size = 0x9000, scoped, tag = 'internal scratch']
  %s0 = inlined_call_operand.vmem [shape: f32[1,4,8,128], index: 0, kind: input, shape index: {}]
  %s1 = inlined_call_operand.vmem [shape: f32[1,16,2], index: 1, kind: input, shape index: {}]
  %s2 = inlined_call_operand.vmem [shape: f32[11,128], index: 2, kind: input, shape index: {}]
  %s3 = inlined_call_operand.vmem [shape: bf16[8,72], index: 3, kind: input, shape index: {}]
  %s4 = inlined_call_operand.vmem [shape: bf16[8,72], index: 4, kind: input, shape index: {}]
  %s5 = inlined_call_operand.vmem [shape: bf16[16,72], index: 5, kind: input, shape index: {}]
  %s6 = inlined_call_operand.vmem [shape: bf16[16,144], index: 6, kind: input, shape index: {}]
  %s7 = inlined_call_operand.vmem [shape: f32[8,4], index: 7, kind: input, shape index: {}]
  %s8 = inlined_call_operand.vmem [shape: f32[16,4], index: 8, kind: input, shape index: {}]
  %s9 = inlined_call_operand.vmem [shape: f32[1,16,128], index: 9, kind: output, shape index: {}]
  %s10 = sld [smem:[#allocation0]]
  $region46: #{_down_forward.1} parent=0
    _
  %s12 = ssub.s32 1, %s10
  %s13 = scalar_select 0, %s12, %s10
  // Predicated region
  $region2: #{_down_forward.1} parent=0 // pred_check
    _
  $region3: #{_down_forward.1} parent=0 // pred_check_branch
    %15 = sbr.rel (0) target = $region5
  $region4: #{_down_forward.1} parent=0 // pred_region
    _
  $region5: #{_down_forward.1} parent=0 // pred_fallthru
    _
  // Predicated region
  $region6: #{_down_forward.1} parent=0 // pred_check
    _
  $region7: #{_down_forward.1} parent=0 // pred_check_branch
    %17 = sbr.rel (0) target = $region9
  $region8: #{_down_forward.1} parent=0 // pred_region
    _
  $region9: #{_down_forward.1} parent=0 // pred_fallthru
    _
  // Predicated region
  $region10: #{_down_forward.1} parent=0 // pred_check
    _
  $region11: #{_down_forward.1} parent=0 // pred_check_branch
    %19 = sbr.rel (0) target = $region13
  $region12: #{_down_forward.1} parent=0 // pred_region
    _
  $region13: #{_down_forward.1} parent=0 // pred_fallthru
    _
  // Predicated region
  $region14: #{_down_forward.1} parent=0 // pred_check
    _
  $region15: #{_down_forward.1} parent=0 // pred_check_branch
    %21 = sbr.rel (0) target = $region17
  $region16: #{_down_forward.1} parent=0 // pred_region
    _
  $region17: #{_down_forward.1} parent=0 // pred_fallthru
    _
  // Predicated region
  $region18: #{_down_forward.1} parent=0 // pred_check
    _
  $region19: #{_down_forward.1} parent=0 // pred_check_branch
    %23 = sbr.rel (0) target = $region21
  $region20: #{_down_forward.1} parent=0 // pred_region
    _
  $region21: #{_down_forward.1} parent=0 // pred_fallthru
    _
  // Predicated region
  $region22: #{_down_forward.1} parent=0 // pred_check
    _
  $region23: #{_down_forward.1} parent=0 // pred_check_branch
    %25 = sbr.rel (0) target = $region25
  $region24: #{_down_forward.1} parent=0 // pred_region
    _
  $region25: #{_down_forward.1} parent=0 // pred_fallthru
    _
  // Predicated region
  $region26: #{_down_forward.1} parent=0 // pred_check
    _
  $region27: #{_down_forward.1} parent=0 // pred_check_branch
    %27 = sbr.rel (0) target = $region29
  $region28: #{_down_forward.1} parent=0 // pred_region
    _
  $region29: #{_down_forward.1} parent=0 // pred_fallthru
    _
  // Predicated region
  $region30: #{_down_forward.1} parent=0 // pred_check
    _
  $region31: #{_down_forward.1} parent=0 // pred_check_branch
    %29 = sbr.rel (0) target = $region33
  $region32: #{_down_forward.1} parent=0 // pred_region
    _
  $region33: #{_down_forward.1} parent=0 // pred_fallthru
    _
  // Predicated region
  $region34: #{_down_forward.1} parent=0 // pred_check
    _
  $region35: #{_down_forward.1} parent=0 // pred_check_branch
    %31 = sbr.rel (0) target = $region37
  $region36: #{_down_forward.1} parent=0 // pred_region
    _
  $region37: #{_down_forward.1} parent=0 // pred_fallthru
    _
  %v33 = vld [vmem:[%s2] sm:$0x1]
  %v34 = vld [vmem:[%s2 + $0x1] sm:$0x1]
  %v35 = vld [vmem:[%s2 + $0x2] sm:$0x1]
  %v36 = vld [vmem:[%s2 + $0x3] sm:$0x1]
  %v37 = vld [vmem:[%s2 + $0x5] sm:$0x1]
  %v38 = vld [vmem:[%s2 + $0x6] sm:$0x1]
  %v39 = vld [vmem:[%s2 + $0x7] sm:$0x1]
  %v40 = vld [vmem:[%s2 + $0x8] sm:$0x1]
  %v41 = vld [vmem:[%s2 + $0x9] sm:$0x1]
  %v42 = vld [vmem:[%s2 + $0xa] sm:$0x1]
  %v43 = vld [vmem:[%s0] sm:$0xff]
  %s44 = scalar_lea.vmem %s0, 8
  %v45 = vld [vmem:[%s44] sm:$0xff]
  %v46 = vmax.f32 %v43, %v45
  %s47 = scalar_lea.vmem %s0, 16
  %v48 = vld [vmem:[%s47] sm:$0xff]
  %s49 = scalar_lea.vmem %s0, 24
  %v50 = vld [vmem:[%s49] sm:$0xff]
  %v51 = vmax.f32 %v48, %v50
  %v52 = vmax.f32 %v46, %v51
  %53 = vrot.lane.b32.xlu0 %v52, 9
  %v54 = vpop.permute.xlu0 %53
  %v55 = vperm.slane %v33, 0
  %v56 = vmul.f32 %v54, %v55
  %57 = vrot.lane.b32.xlu0 %v52, 8
  %v58 = vpop.permute.xlu0 %57
  %v59 = vperm.slane %v34, 0
  %v60 = vmul.f32 %v58, %v59
  %61 = vrot.lane.b32.xlu0 %v52, 7
  %v62 = vpop.permute.xlu0 %61
  %v63 = vperm.slane %v35, 0
  %v64 = vmul.f32 %v62, %v63
  %65 = vrot.lane.b32.xlu0 %v52, 1
  %v66 = vpop.permute.xlu0 %65
  %v67 = vperm.slane %v36, 0
  %v68 = vmul.f32 %v66, %v67
  %69 = vrot.lane.b32.xlu0 %v52, 127
  %v70 = vpop.permute.xlu0 %69
  %v71 = vperm.slane %v37, 0
  %v72 = vmul.f32 %v70, %v71
  %73 = vrot.lane.b32.xlu0 %v52, 121
  %v74 = vpop.permute.xlu0 %73
  %v75 = vperm.slane %v38, 0
  %v76 = vmul.f32 %v74, %v75
  %77 = vrot.lane.b32.xlu0 %v52, 120
  %v78 = vpop.permute.xlu0 %77
  %v79 = vperm.slane %v39, 0
  %v80 = vmul.f32 %v78, %v79
  %81 = vrot.lane.b32.xlu0 %v52, 119
  %v82 = vpop.permute.xlu0 %81
  %v83 = vperm.slane %v40, 0
  %v84 = vmul.f32 %v82, %v83
  %v85 = vpack.c.bf16 %v60, %v56
  %v86 = vpack.c.bf16 %v68, %v64
  %v87 = vpack.c.bf16 %v72, %v52
  %v88 = vpack.c.bf16 %v80, %v76
  %v89 = vpack.c.bf16 %v84, %v84
  %v90 = vld [vmem:[%s3] sm:$0xf]
  %vm91 = vcmask 588800
  %v93 = vsel %vm91, %v90, 0
  %vm95 = vcmask 1043456
  %v97 = vsel %vm95, %v89, 0
  %99 = vmatpush.bf16.msra.mxu0 0
  %100 = vmatpush.bf16.msra.mxu0 0
  %101 = vmatpush.bf16.msra.mxu0 0
  %102 = vmatpush.bf16.msra.mxu0 %v97
  %103 = vmatpush.bf16.msra.mxu0 %v88
  %104 = vmatpush.bf16.msra.mxu0 %v87
  %105 = vmatpush.bf16.msra.mxu0 %v86
  %106 = vmatpush.bf16.msra.mxu0 %v85
  %107 = vmatmul.bf16.gmra.mxu0 %v93
  %v108 = vpop.f32.mrf.mxu0
  %v109 = vadd.f32 0.0, %v108
  %v110 = vpop.f32.mrf.mxu0
  %111 = vdwg.mxu0
  %v112 = vrot.slane %v109, 4
  %v113 = vadd.f32 %v109, %v112
  %v114 = vrot.slane %v113, 2
  %v115 = vadd.f32 %v113, %v114
  %v116 = vrot.slane %v115, 1
  %v117 = vadd.f32 %v115, %v116
  %v118 = vmul.f32 %v117, %v41
  %vm119 = vcmask 1040384
  %v120 = vsel %vm119, %v118, 0.0
  %121 = vadd.xlane.f32.xlu0 %v120
  %v122 = vpop.xlane.xlu0 %121
  %v123 = vmul.f32 %v122, 0.001953125
  %v124 = vmul.f32 %v41, %v123
  %v125 = vadd.f32 %v124, 0.0
  %v126 = vmul.f32 %v117, %v42
  %v127 = vsel %vm119, %v126, 0.0
  %128 = vadd.xlane.f32.xlu0 %v127
  %v129 = vpop.xlane.xlu0 %128
  %v130 = vmul.f32 %v129, 0.001953125
  %v131 = vmul.f32 %v42, %v130
  %v132 = vadd.f32 %v125, %v131
  %v133 = vperm.slane %v132, 0
  %v134 = vsub.f32 %v109, %v133
  %v135 = vmul.f32 %v134, %v134
  %v136 = vrot.slane %v135, 4
  %v137 = vadd.f32 %v135, %v136
  %v138 = vrot.slane %v137, 2
  %v139 = vadd.f32 %v137, %v138
  %v140 = vrot.slane %v139, 1
  %v141 = vadd.f32 %v139, %v140
  %v142 = vmul.f32 %v141, %v41
  %v143 = vsel %vm119, %v142, 0.0
  %144 = vadd.xlane.f32.xlu0 %v143
  %v145 = vpop.xlane.xlu0 %144
  %v146 = vmul.f32 %v145, 0.001953125
  %v147 = vmul.f32 %v41, %v146
  %v148 = vadd.f32 %v147, 0.0
  %v149 = vmul.f32 %v141, %v42
  %v150 = vsel %vm119, %v149, 0.0
  %151 = vadd.xlane.f32.xlu0 %v150
  %v152 = vpop.xlane.xlu0 %151
  %v153 = vmul.f32 %v152, 0.001953125
  %v154 = vmul.f32 %v42, %v153
  %v155 = vadd.f32 %v148, %v154
  %v156 = vld [vmem:[%s7] sm:$0xff]
  %v157 = vadd.f32 %v155, 1e-05
  %v158 = vrsqrt.pop %v157
  %v159 = vmul.f32 %v158, %v157
  %v160 = vmul.f32 %v159, %v158
  %v161 = vmul.f32 0.5, %v160
  %v162 = vsub.f32 1.5, %v161
  %v163 = vmul.f32 %v158, %v162
  %vm164 = vweird.f32 %v157
  %vm165 = vweird.f32 %v158
  %vm166 = vmor %vm164, %vm165
  %v167 = vsel %vm166, %v158, %v163
  %v168 = vperm.slane %v167, 0
  %v169 = vmul.f32 %v134, %v168
  %171 = vset.pattern.permute.xlu0 0
  %172 = vperm.xlu0 %171, %v156
  %v173 = vpop.permute.xlu0 %172
  %v175 = vmul.f32 %v169, %v173
  %176 = vset.pattern.permute.xlu0 1
  %177 = vperm.xlu0 %176, %v156
  %v178 = vpop.permute.xlu0 %177
  %v180 = vadd.f32 %v175, %v178
  %v181 = vmul.f32 %v180, 0.5
  %v182 = vmul.f32 %v180, 0.70710677
  %v183 = vmul.f32 %v182, %v182
  %v184 = vmin.f32 16.0, %v183
  %v185 = vmul.f32 %v184, 2.1237322e-06
  %v186 = vadd.f32 %v185, 0.00028619796
  %v187 = vmul.f32 %v184, %v186
  %v188 = vadd.f32 %v187, 0.0036580483
  %v189 = vmul.f32 %v184, %v188
  %v190 = vadd.f32 %v189, 0.05243302
  %v191 = vmul.f32 %v184, %v190
  %v192 = vadd.f32 %v191, 0.18741608
  %v193 = vmul.f32 %v184, %v192
  %v194 = vadd.f32 %v193, 1.1283791
  %v195 = vmul.f32 %v182, %v194
  %v196 = vmul.f32 %v184, 3.8918573e-05
  %v197 = vadd.f32 %v196, 0.001143296
  %v198 = vmul.f32 %v184, %v197
  %v199 = vadd.f32 %v198, 0.014752088
  %v200 = vmul.f32 %v184, %v199
  %v201 = vadd.f32 %v200, 0.112945676
  %v202 = vmul.f32 %v184, %v201
  %v203 = vadd.f32 %v202, 0.4994258
  %v204 = vmul.f32 %v184, %v203
  %v205 = vadd.f32 %v204, 1.0
  %v206 = vrcp.pop %v205
  %v207 = vmul.f32 %v205, %v206
  %v208 = vsub.f32 1.0, %v207
  %v209 = vmul.f32 %v206, %v208
  %v210 = vadd.f32 %v206, %v209
  %vm211 = vweird.f32 %v205
  %vm212 = vweird.f32 %v206
  %vm213 = vmor %vm211, %vm212
  %v214 = vsel %vm213, %v206, %v210
  %v215 = vand.u32 2147483647, %v205
  %vm216 = vcmp.eq.f32.partialorder %v215, 8.507059e+37
  %v217 = vand.u32 %v205, 2147483648
  %v218 = vor.u32 1.1754944e-38, %v217
  %v219 = vsel %vm216, %v218, %v214
  %v220 = vmul.f32 %v195, %v219
  %v221 = vmin.f32 %v220, 1.0
  %v222 = vmax.f32 %v221, -1.0
  %v223 = vadd.f32 %v222, 1.0
  %v224 = vmul.f32 %v181, %v223
  %225 = vrot.lane.b32.xlu0 %v224, 9
  %v226 = vpop.permute.xlu0 %225
  %v227 = vmul.f32 %v226, %v55
  %228 = vrot.lane.b32.xlu0 %v224, 8
  %v229 = vpop.permute.xlu0 %228
  %v230 = vmul.f32 %v229, %v59
  %231 = vrot.lane.b32.xlu0 %v224, 7
  %v232 = vpop.permute.xlu0 %231
  %v233 = vmul.f32 %v232, %v63
  %234 = vrot.lane.b32.xlu0 %v224, 1
  %v235 = vpop.permute.xlu0 %234
  %v236 = vmul.f32 %v235, %v67
  %237 = vrot.lane.b32.xlu0 %v224, 127
  %v238 = vpop.permute.xlu0 %237
  %v239 = vmul.f32 %v238, %v71
  %240 = vrot.lane.b32.xlu0 %v224, 121
  %v241 = vpop.permute.xlu0 %240
  %v242 = vmul.f32 %v241, %v75
  %243 = vrot.lane.b32.xlu0 %v224, 120
  %v244 = vpop.permute.xlu0 %243
  %v245 = vmul.f32 %v244, %v79
  %246 = vrot.lane.b32.xlu0 %v224, 119
  %v247 = vpop.permute.xlu0 %246
  %v248 = vmul.f32 %v247, %v83
  %v249 = vpack.c.bf16 %v230, %v227
  %v250 = vpack.c.bf16 %v236, %v233
  %v251 = vpack.c.bf16 %v239, %v224
  %v252 = vpack.c.bf16 %v245, %v242
  %v253 = vpack.c.bf16 %v248, %v248
  %v254 = vld [vmem:[%s4] sm:$0xf]
  %v256 = vsel %vm91, %v254, 0
  %v259 = vsel %vm95, %v253, 0
  %261 = vmatpush.bf16.msra.mxu0 0
  %262 = vmatpush.bf16.msra.mxu0 0
  %263 = vmatpush.bf16.msra.mxu0 0
  %264 = vmatpush.bf16.msra.mxu0 %v259
  %265 = vmatpush.bf16.msra.mxu0 %v252
  %266 = vmatpush.bf16.msra.mxu0 %v251
  %267 = vmatpush.bf16.msra.mxu0 %v250
  %268 = vmatpush.bf16.msra.mxu0 %v249
  %269 = vmatmul.bf16.gmra.mxu0 %v256
  %v270 = vpop.f32.mrf.mxu0
  %v271 = vadd.f32 0.0, %v270
  %v272 = vpop.f32.mrf.mxu0
  %273 = vdwg.mxu0
  %v274 = vrot.slane %v271, 4
  %v275 = vadd.f32 %v271, %v274
  %v276 = vrot.slane %v275, 2
  %v277 = vadd.f32 %v275, %v276
  %v278 = vrot.slane %v277, 1
  %v279 = vadd.f32 %v277, %v278
  %v280 = vmul.f32 %v279, %v41
  %v281 = vsel %vm119, %v280, 0.0
  %282 = vadd.xlane.f32.xlu0 %v281
  %v283 = vpop.xlane.xlu0 %282
  %v284 = vmul.f32 %v283, 0.001953125
  %v285 = vmul.f32 %v41, %v284
  %v286 = vadd.f32 %v285, 0.0
  %v287 = vmul.f32 %v279, %v42
  %v288 = vsel %vm119, %v287, 0.0
  %289 = vadd.xlane.f32.xlu0 %v288
  %v290 = vpop.xlane.xlu0 %289
  %v291 = vmul.f32 %v290, 0.001953125
  %v292 = vmul.f32 %v42, %v291
  %v293 = vadd.f32 %v286, %v292
  %v294 = vperm.slane %v293, 0
  %v295 = vsub.f32 %v271, %v294
  %v296 = vmul.f32 %v295, %v295
  %v297 = vrot.slane %v296, 4
  %v298 = vadd.f32 %v296, %v297
  %v299 = vrot.slane %v298, 2
  %v300 = vadd.f32 %v298, %v299
  %v301 = vrot.slane %v300, 1
  %v302 = vadd.f32 %v300, %v301
  %v303 = vmul.f32 %v302, %v41
  %v304 = vsel %vm119, %v303, 0.0
  %305 = vadd.xlane.f32.xlu0 %v304
  %v306 = vpop.xlane.xlu0 %305
  %v307 = vmul.f32 %v306, 0.001953125
  %v308 = vmul.f32 %v41, %v307
  %v309 = vadd.f32 %v308, 0.0
  %v310 = vmul.f32 %v302, %v42
  %v311 = vsel %vm119, %v310, 0.0
  %312 = vadd.xlane.f32.xlu0 %v311
  %v313 = vpop.xlane.xlu0 %312
  %v314 = vmul.f32 %v313, 0.001953125
  %v315 = vmul.f32 %v42, %v314
  %v316 = vadd.f32 %v309, %v315
  %v317 = vadd.f32 %v316, 1e-05
  %v318 = vrsqrt.pop %v317
  %v319 = vmul.f32 %v318, %v317
  %v320 = vmul.f32 %v319, %v318
  %v321 = vmul.f32 0.5, %v320
  %v322 = vsub.f32 1.5, %v321
  %v323 = vmul.f32 %v318, %v322
  %vm324 = vweird.f32 %v317
  %vm325 = vweird.f32 %v318
  %vm326 = vmor %vm324, %vm325
  %v327 = vsel %vm326, %v318, %v323
  %v328 = vperm.slane %v327, 0
  %v329 = vmul.f32 %v295, %v328
  %330 = vset.pattern.permute.xlu0 2
  %331 = vperm.xlu0 %330, %v156
  %v332 = vpop.permute.xlu0 %331
  %v334 = vmul.f32 %v329, %v332
  %335 = vset.pattern.permute.xlu0 3
  %336 = vperm.xlu0 %335, %v156
  %v337 = vpop.permute.xlu0 %336
  %v339 = vadd.f32 %v334, %v337
  %v340 = vadd.f32 %v52, %v339
  %v341 = vmul.f32 %v340, 0.5
  %v342 = vmul.f32 %v340, 0.70710677
  %v343 = vmul.f32 %v342, %v342
  %v344 = vmin.f32 16.0, %v343
  %v345 = vmul.f32 %v344, 2.1237322e-06
  %v346 = vadd.f32 %v345, 0.00028619796
  %v347 = vmul.f32 %v344, %v346
  %v348 = vadd.f32 %v347, 0.0036580483
  %v349 = vmul.f32 %v344, %v348
  %v350 = vadd.f32 %v349, 0.05243302
  %v351 = vmul.f32 %v344, %v350
  %v352 = vadd.f32 %v351, 0.18741608
  %v353 = vmul.f32 %v344, %v352
  %v354 = vadd.f32 %v353, 1.1283791
  %v355 = vmul.f32 %v342, %v354
  %v356 = vmul.f32 %v344, 3.8918573e-05
  %v357 = vadd.f32 %v356, 0.001143296
  %v358 = vmul.f32 %v344, %v357
  %v359 = vadd.f32 %v358, 0.014752088
  %v360 = vmul.f32 %v344, %v359
  %v361 = vadd.f32 %v360, 0.112945676
  %v362 = vmul.f32 %v344, %v361
  %v363 = vadd.f32 %v362, 0.4994258
  %v364 = vmul.f32 %v344, %v363
  %v365 = vadd.f32 %v364, 1.0
  %v366 = vrcp.pop %v365
  %v367 = vmul.f32 %v365, %v366
  %v368 = vsub.f32 1.0, %v367
  %v369 = vmul.f32 %v366, %v368
  %v370 = vadd.f32 %v366, %v369
  %vm371 = vweird.f32 %v365
  %vm372 = vweird.f32 %v366
  %vm373 = vmor %vm371, %vm372
  %v374 = vsel %vm373, %v366, %v370
  %v375 = vand.u32 2147483647, %v365
  %vm376 = vcmp.eq.f32.partialorder %v375, 8.507059e+37
  %v377 = vand.u32 %v365, 2147483648
  %v378 = vor.u32 1.1754944e-38, %v377
  %v379 = vsel %vm376, %v378, %v374
  %v380 = vmul.f32 %v355, %v379
  %v381 = vmin.f32 %v380, 1.0
  %v382 = vmax.f32 %v381, -1.0
  %v383 = vadd.f32 %v382, 1.0
  %v384 = vmul.f32 %v341, %v383
  %385 = vrot.lane.b32.xlu0 %v384, 9
  %v386 = vpop.permute.xlu0 %385
  %v387 = vmul.f32 %v386, %v55
  %388 = vrot.lane.b32.xlu0 %v384, 8
  %v389 = vpop.permute.xlu0 %388
  %v390 = vmul.f32 %v389, %v59
  %391 = vrot.lane.b32.xlu0 %v384, 7
  %v392 = vpop.permute.xlu0 %391
  %v393 = vmul.f32 %v392, %v63
  %394 = vrot.lane.b32.xlu0 %v384, 1
  %v395 = vpop.permute.xlu0 %394
  %v396 = vmul.f32 %v395, %v67
  %397 = vrot.lane.b32.xlu0 %v384, 127
  %v398 = vpop.permute.xlu0 %397
  %v399 = vmul.f32 %v398, %v71
  %400 = vrot.lane.b32.xlu0 %v384, 121
  %v401 = vpop.permute.xlu0 %400
  %v402 = vmul.f32 %v401, %v75
  %403 = vrot.lane.b32.xlu0 %v384, 120
  %v404 = vpop.permute.xlu0 %403
  %v405 = vmul.f32 %v404, %v79
  %406 = vrot.lane.b32.xlu0 %v384, 119
  %v407 = vpop.permute.xlu0 %406
  %v408 = vmul.f32 %v407, %v83
  %v409 = vpack.c.bf16 %v390, %v387
  %v410 = vpack.c.bf16 %v396, %v393
  %v411 = vpack.c.bf16 %v399, %v384
  %v412 = vpack.c.bf16 %v405, %v402
  %v413 = vpack.c.bf16 %v408, %v408
  %v414 = vld [vmem:[%s5] sm:$0xf]
  %v415 = vld [vmem:[%s5 + $0x4] sm:$0xf]
  %v418 = vunpack.c.l.b16 %v414
  %v419 = vunpack.c.l.b16 %v415
  %v420 = vpack.c.b16 %v419, %v418
  %v422 = vsel %vm91, %v420, 0
  %v425 = vsel %vm95, %v413, 0
  %427 = vmatpush.bf16.msra.mxu0 0
  %428 = vmatpush.bf16.msra.mxu0 0
  %429 = vmatpush.bf16.msra.mxu0 0
  %430 = vmatpush.bf16.msra.mxu0 %v425
  %431 = vmatpush.bf16.msra.mxu0 %v412
  %432 = vmatpush.bf16.msra.mxu0 %v411
  %433 = vmatpush.bf16.msra.mxu0 %v410
  %434 = vmatpush.bf16.msra.mxu0 %v409
  %435 = vmatmul.bf16.gmra.mxu0 %v422
  %v436 = vpop.f32.mrf.mxu0
  %v437 = vadd.f32 0.0, %v436
  %v438 = vpop.f32.mrf.mxu0
  %v439 = vadd.f32 0.0, %v438
  %440 = vdwg.mxu0
  %v441 = vadd.f32 %v437, %v439
  %v442 = vrot.slane %v441, 4
  %v443 = vadd.f32 %v441, %v442
  %v444 = vrot.slane %v443, 2
  %v445 = vadd.f32 %v443, %v444
  %v446 = vrot.slane %v445, 1
  %v447 = vadd.f32 %v445, %v446
  %v448 = vmul.f32 %v447, %v41
  %v449 = vsel %vm119, %v448, 0.0
  %450 = vadd.xlane.f32.xlu0 %v449
  %v451 = vpop.xlane.xlu0 %450
  %v452 = vmul.f32 %v451, 0.0009765625
  %v453 = vmul.f32 %v41, %v452
  %v454 = vadd.f32 %v453, 0.0
  %v455 = vmul.f32 %v447, %v42
  %v456 = vsel %vm119, %v455, 0.0
  %457 = vadd.xlane.f32.xlu0 %v456
  %v458 = vpop.xlane.xlu0 %457
  %v459 = vmul.f32 %v458, 0.0009765625
  %v460 = vmul.f32 %v42, %v459
  %v461 = vadd.f32 %v454, %v460
  %v462 = vperm.slane %v461, 0
  %v463 = vsub.f32 %v437, %v462
  %v464 = vsub.f32 %v439, %v462
  %v465 = vmul.f32 %v463, %v463
  %v466 = vmul.f32 %v464, %v464
  %v467 = vadd.f32 %v465, %v466
  %v468 = vrot.slane %v467, 4
  %v469 = vadd.f32 %v467, %v468
  %v470 = vrot.slane %v469, 2
  %v471 = vadd.f32 %v469, %v470
  %v472 = vrot.slane %v471, 1
  %v473 = vadd.f32 %v471, %v472
  %v474 = vmul.f32 %v473, %v41
  %v475 = vsel %vm119, %v474, 0.0
  %476 = vadd.xlane.f32.xlu0 %v475
  %v477 = vpop.xlane.xlu0 %476
  %v478 = vmul.f32 %v477, 0.0009765625
  %v479 = vmul.f32 %v41, %v478
  %v480 = vadd.f32 %v479, 0.0
  %v481 = vmul.f32 %v473, %v42
  %v482 = vsel %vm119, %v481, 0.0
  %483 = vadd.xlane.f32.xlu0 %v482
  %v484 = vpop.xlane.xlu0 %483
  %v485 = vmul.f32 %v484, 0.0009765625
  %v486 = vmul.f32 %v42, %v485
  %v487 = vadd.f32 %v480, %v486
  %v488 = vld [vmem:[%s8] sm:$0xff]
  %v489 = vld [vmem:[%s8 + $0x8] sm:$0xff]
  %v490 = vadd.f32 %v487, 1e-05
  %v491 = vrsqrt.pop %v490
  %v492 = vmul.f32 %v491, %v490
  %v493 = vmul.f32 %v492, %v491
  %v494 = vmul.f32 0.5, %v493
  %v495 = vsub.f32 1.5, %v494
  %v496 = vmul.f32 %v491, %v495
  %vm497 = vweird.f32 %v490
  %vm498 = vweird.f32 %v491
  %vm499 = vmor %vm497, %vm498
  %v500 = vsel %vm499, %v491, %v496
  %v501 = vperm.slane %v500, 0
  %v502 = vmul.f32 %v463, %v501
  %v503 = vmul.f32 %v464, %v501
  %505 = vset.pattern.permute.xlu0 0
  %506 = vperm.xlu0 %505, %v488
  %v507 = vpop.permute.xlu0 %506
  %510 = vset.pattern.permute.xlu0 0
  %511 = vperm.xlu0 %510, %v489
  %v512 = vpop.permute.xlu0 %511
  %v514 = vmul.f32 %v502, %v507
  %v515 = vmul.f32 %v503, %v512
  %516 = vset.pattern.permute.xlu0 1
  %517 = vperm.xlu0 %516, %v488
  %v518 = vpop.permute.xlu0 %517
  %520 = vset.pattern.permute.xlu0 1
  %521 = vperm.xlu0 %520, %v489
  %v522 = vpop.permute.xlu0 %521
  %v524 = vadd.f32 %v514, %v518
  %v525 = vadd.f32 %v515, %v522
  %v526 = vmul.f32 %v524, 0.5
  %v527 = vmul.f32 %v525, 0.5
  %v528 = vmul.f32 %v524, 0.70710677
  %v529 = vmul.f32 %v525, 0.70710677
  %v530 = vmul.f32 %v528, %v528
  %v531 = vmin.f32 16.0, %v530
  %v532 = vmul.f32 %v531, 2.1237322e-06
  %v533 = vadd.f32 %v532, 0.00028619796
  %v534 = vmul.f32 %v531, %v533
  %v535 = vadd.f32 %v534, 0.0036580483
  %v536 = vmul.f32 %v531, %v535
  %v537 = vadd.f32 %v536, 0.05243302
  %v538 = vmul.f32 %v531, %v537
  %v539 = vadd.f32 %v538, 0.18741608
  %v540 = vmul.f32 %v531, %v539
  %v541 = vadd.f32 %v540, 1.1283791
  %v542 = vmul.f32 %v528, %v541
  %v543 = vmul.f32 %v531, 3.8918573e-05
  %v544 = vadd.f32 %v543, 0.001143296
  %v545 = vmul.f32 %v531, %v544
  %v546 = vadd.f32 %v545, 0.014752088
  %v547 = vmul.f32 %v531, %v546
  %v548 = vadd.f32 %v547, 0.112945676
  %v549 = vmul.f32 %v531, %v548
  %v550 = vadd.f32 %v549, 0.4994258
  %v551 = vmul.f32 %v531, %v550
  %v552 = vadd.f32 %v551, 1.0
  %v553 = vrcp.pop %v552
  %v554 = vmul.f32 %v552, %v553
  %v555 = vsub.f32 1.0, %v554
  %v556 = vmul.f32 %v553, %v555
  %v557 = vadd.f32 %v553, %v556
  %vm558 = vweird.f32 %v552
  %vm559 = vweird.f32 %v553
  %vm560 = vmor %vm558, %vm559
  %v561 = vsel %vm560, %v553, %v557
  %v562 = vand.u32 2147483647, %v552
  %vm563 = vcmp.eq.f32.partialorder %v562, 8.507059e+37
  %v564 = vand.u32 %v552, 2147483648
  %v565 = vor.u32 1.1754944e-38, %v564
  %v566 = vsel %vm563, %v565, %v561
  %v567 = vmul.f32 %v542, %v566
  %v568 = vmin.f32 %v567, 1.0
  %v569 = vmax.f32 %v568, -1.0
  %v570 = vmul.f32 %v529, %v529
  %v571 = vmin.f32 16.0, %v570
  %v572 = vmul.f32 %v571, 2.1237322e-06
  %v573 = vadd.f32 %v572, 0.00028619796
  %v574 = vmul.f32 %v571, %v573
  %v575 = vadd.f32 %v574, 0.0036580483
  %v576 = vmul.f32 %v571, %v575
  %v577 = vadd.f32 %v576, 0.05243302
  %v578 = vmul.f32 %v571, %v577
  %v579 = vadd.f32 %v578, 0.18741608
  %v580 = vmul.f32 %v571, %v579
  %v581 = vadd.f32 %v580, 1.1283791
  %v582 = vmul.f32 %v529, %v581
  %v583 = vmul.f32 %v571, 3.8918573e-05
  %v584 = vadd.f32 %v583, 0.001143296
  %v585 = vmul.f32 %v571, %v584
  %v586 = vadd.f32 %v585, 0.014752088
  %v587 = vmul.f32 %v571, %v586
  %v588 = vadd.f32 %v587, 0.112945676
  %v589 = vmul.f32 %v571, %v588
  %v590 = vadd.f32 %v589, 0.4994258
  %v591 = vmul.f32 %v571, %v590
  %v592 = vadd.f32 %v591, 1.0
  %v593 = vrcp.pop %v592
  %v594 = vmul.f32 %v592, %v593
  %v595 = vsub.f32 1.0, %v594
  %v596 = vmul.f32 %v593, %v595
  %v597 = vadd.f32 %v593, %v596
  %vm598 = vweird.f32 %v592
  %vm599 = vweird.f32 %v593
  %vm600 = vmor %vm598, %vm599
  %v601 = vsel %vm600, %v593, %v597
  %v602 = vand.u32 2147483647, %v592
  %vm603 = vcmp.eq.f32.partialorder %v602, 8.507059e+37
  %v604 = vand.u32 %v592, 2147483648
  %v605 = vor.u32 1.1754944e-38, %v604
  %v606 = vsel %vm603, %v605, %v601
  %v607 = vmul.f32 %v582, %v606
  %v608 = vmin.f32 %v607, 1.0
  %v609 = vmax.f32 %v608, -1.0
  %v610 = vadd.f32 %v569, 1.0
  %v611 = vadd.f32 %v609, 1.0
  %v612 = vmul.f32 %v526, %v610
  %v613 = vmul.f32 %v527, %v611
  %614 = vrot.lane.b32.xlu0 %v612, 9
  %v615 = vpop.permute.xlu0 %614
  %616 = vrot.lane.b32.xlu0 %v613, 9
  %v617 = vpop.permute.xlu0 %616
  %v618 = vmul.f32 %v615, %v55
  %v619 = vmul.f32 %v617, %v55
  %620 = vrot.lane.b32.xlu0 %v612, 8
  %v621 = vpop.permute.xlu0 %620
  %622 = vrot.lane.b32.xlu0 %v613, 8
  %v623 = vpop.permute.xlu0 %622
  %v624 = vmul.f32 %v621, %v59
  %v625 = vmul.f32 %v623, %v59
  %626 = vrot.lane.b32.xlu0 %v612, 7
  %v627 = vpop.permute.xlu0 %626
  %628 = vrot.lane.b32.xlu0 %v613, 7
  %v629 = vpop.permute.xlu0 %628
  %v630 = vmul.f32 %v627, %v63
  %v631 = vmul.f32 %v629, %v63
  %632 = vrot.lane.b32.xlu0 %v612, 1
  %v633 = vpop.permute.xlu0 %632
  %634 = vrot.lane.b32.xlu0 %v613, 1
  %v635 = vpop.permute.xlu0 %634
  %v636 = vmul.f32 %v633, %v67
  %v637 = vmul.f32 %v635, %v67
  %638 = vrot.lane.b32.xlu0 %v612, 127
  %v639 = vpop.permute.xlu0 %638
  %640 = vrot.lane.b32.xlu0 %v613, 127
  %v641 = vpop.permute.xlu0 %640
  %v642 = vmul.f32 %v639, %v71
  %v643 = vmul.f32 %v641, %v71
  %644 = vrot.lane.b32.xlu0 %v612, 121
  %v645 = vpop.permute.xlu0 %644
  %646 = vrot.lane.b32.xlu0 %v613, 121
  %v647 = vpop.permute.xlu0 %646
  %v648 = vmul.f32 %v645, %v75
  %v649 = vmul.f32 %v647, %v75
  %650 = vrot.lane.b32.xlu0 %v612, 120
  %v651 = vpop.permute.xlu0 %650
  %652 = vrot.lane.b32.xlu0 %v613, 120
  %v653 = vpop.permute.xlu0 %652
  %v654 = vmul.f32 %v651, %v79
  %v655 = vmul.f32 %v653, %v79
  %656 = vrot.lane.b32.xlu0 %v612, 119
  %v657 = vpop.permute.xlu0 %656
  %658 = vrot.lane.b32.xlu0 %v613, 119
  %v659 = vpop.permute.xlu0 %658
  %v660 = vmul.f32 %v657, %v83
  %v661 = vmul.f32 %v659, %v83
  %v662 = vpack.c.bf16 %v619, %v618
  %v663 = vpack.c.bf16 %v625, %v624
  %v664 = vpack.c.bf16 %v631, %v630
  %v665 = vpack.c.bf16 %v637, %v636
  %v666 = vpack.c.bf16 %v613, %v612
  %v667 = vpack.c.bf16 %v643, %v642
  %v668 = vpack.c.bf16 %v649, %v648
  %v669 = vpack.c.bf16 %v655, %v654
  %v670 = vpack.c.bf16 %v661, %v660
  %v671 = vld [vmem:[%s6] sm:$0xff]
  %v672 = vld [vmem:[%s6 + $0x8] sm:$0xff]
  %v675 = vunpack.c.l.b16 %v671
  %v676 = vunpack.c.h.b16 %v671
  %v677 = vunpack.c.l.b16 %v672
  %v678 = vunpack.c.h.b16 %v672
  %v679 = vpack.c.b16 %v677, %v675
  %v680 = vpack.c.b16 %v678, %v676
  %vm682 = vcmask 130048
  %v684 = vsel %vm682, %v680, 0
  %686 = vmatpush.bf16.msra.mxu0 %v669
  %687 = vmatpush.bf16.msra.mxu0 %v668
  %688 = vmatpush.bf16.msra.mxu0 %v667
  %689 = vmatpush.bf16.msra.mxu0 %v666
  %690 = vmatpush.bf16.msra.mxu0 %v665
  %691 = vmatpush.bf16.msra.mxu0 %v664
  %692 = vmatpush.bf16.msra.mxu0 %v663
  %693 = vmatpush.bf16.msra.mxu0 %v662
  %694 = vmatmul.bf16.gmra.mxu0 %v679
  %v695 = vpop.f32.mrf.mxu0
  %v696 = vadd.f32 0.0, %v695
  %v697 = vpop.f32.mrf.mxu0
  %v698 = vadd.f32 0.0, %v697
  %699 = vdwg.mxu0
  %700 = vmatpush.bf16.msra.mxu0 0
  %701 = vmatpush.bf16.msra.mxu0 0
  %702 = vmatpush.bf16.msra.mxu0 0
  %703 = vmatpush.bf16.msra.mxu0 0
  %704 = vmatpush.bf16.msra.mxu0 0
  %705 = vmatpush.bf16.msra.mxu0 0
  %706 = vmatpush.bf16.msra.mxu0 0
  %707 = vmatpush.bf16.msra.mxu0 %v670
  %708 = vmatmul.bf16.gmra.mxu0 %v684
  %v709 = vpop.f32.mrf.mxu0
  %v710 = vadd.f32 %v696, %v709
  %v711 = vpop.f32.mrf.mxu0
  %v712 = vadd.f32 %v698, %v711
  %713 = vdwg.mxu0
  %v714 = vadd.f32 %v710, %v712
  %v715 = vrot.slane %v714, 4
  %v716 = vadd.f32 %v714, %v715
  %v717 = vrot.slane %v716, 2
  %v718 = vadd.f32 %v716, %v717
  %v719 = vrot.slane %v718, 1
  %v720 = vadd.f32 %v718, %v719
  %v721 = vmul.f32 %v720, %v41
  %v722 = vsel %vm119, %v721, 0.0
  %723 = vadd.xlane.f32.xlu0 %v722
  %v724 = vpop.xlane.xlu0 %723
  %v725 = vmul.f32 %v724, 0.0009765625
  %v726 = vmul.f32 %v41, %v725
  %v727 = vadd.f32 %v726, 0.0
  %v728 = vmul.f32 %v720, %v42
  %v729 = vsel %vm119, %v728, 0.0
  %730 = vadd.xlane.f32.xlu0 %v729
  %v731 = vpop.xlane.xlu0 %730
  %v732 = vmul.f32 %v731, 0.0009765625
  %v733 = vmul.f32 %v42, %v732
  %v734 = vadd.f32 %v727, %v733
  %v735 = vperm.slane %v734, 0
  %v736 = vsub.f32 %v710, %v735
  %v737 = vsub.f32 %v712, %v735
  %v738 = vmul.f32 %v736, %v736
  %v739 = vmul.f32 %v737, %v737
  %v740 = vadd.f32 %v738, %v739
  %v741 = vrot.slane %v740, 4
  %v742 = vadd.f32 %v740, %v741
  %v743 = vrot.slane %v742, 2
  %v744 = vadd.f32 %v742, %v743
  %v745 = vrot.slane %v744, 1
  %v746 = vadd.f32 %v744, %v745
  %v747 = vmul.f32 %v746, %v41
  %v748 = vsel %vm119, %v747, 0.0
  %749 = vadd.xlane.f32.xlu0 %v748
  %v750 = vpop.xlane.xlu0 %749
  %v751 = vmul.f32 %v750, 0.0009765625
  %v752 = vmul.f32 %v41, %v751
  %v753 = vadd.f32 %v752, 0.0
  %v754 = vmul.f32 %v746, %v42
  %v755 = vsel %vm119, %v754, 0.0
  %756 = vadd.xlane.f32.xlu0 %v755
  %v757 = vpop.xlane.xlu0 %756
  %v758 = vmul.f32 %v757, 0.0009765625
  %v759 = vmul.f32 %v42, %v758
  %v760 = vadd.f32 %v753, %v759
  %v761 = vadd.f32 %v760, 1e-05
  %v762 = vrsqrt.pop %v761
  %v763 = vmul.f32 %v762, %v761
  %v764 = vmul.f32 %v763, %v762
  %v765 = vmul.f32 0.5, %v764
  %v766 = vsub.f32 1.5, %v765
  %v767 = vmul.f32 %v762, %v766
  %vm768 = vweird.f32 %v761
  %vm769 = vweird.f32 %v762
  %vm770 = vmor %vm768, %vm769
  %v771 = vsel %vm770, %v762, %v767
  %v772 = vperm.slane %v771, 0
  %v773 = vmul.f32 %v736, %v772
  %v774 = vmul.f32 %v737, %v772
  %775 = vset.pattern.permute.xlu0 2
  %776 = vperm.xlu0 %775, %v488
  %v777 = vpop.permute.xlu0 %776
  %779 = vset.pattern.permute.xlu0 2
  %780 = vperm.xlu0 %779, %v489
  %v781 = vpop.permute.xlu0 %780
  %v783 = vmul.f32 %v773, %v777
  %v784 = vmul.f32 %v774, %v781
  %785 = vset.pattern.permute.xlu0 3
  %786 = vperm.xlu0 %785, %v488
  %v787 = vpop.permute.xlu0 %786
  %789 = vset.pattern.permute.xlu0 3
  %790 = vperm.xlu0 %789, %v489
  %v791 = vpop.permute.xlu0 %790
  %v793 = vadd.f32 %v783, %v787
  %v794 = vadd.f32 %v784, %v791
  %v795 = vld [vmem:[%s1] sm:$0xff]
  %v796 = vld [vmem:[%s1 + $0x8] sm:$0xff]
  %v797 = vperm.slane %v41, 0
  %799 = vset.pattern.permute.xlu0 0
  %800 = vperm.xlu0 %799, %v795
  %v801 = vpop.permute.xlu0 %800
  %804 = vset.pattern.permute.xlu0 0
  %805 = vperm.xlu0 %804, %v796
  %v806 = vpop.permute.xlu0 %805
  %v808 = vmul.f32 %v797, %v801
  %v809 = vmul.f32 %v797, %v806
  %v810 = vadd.f32 %v808, 0.0
  %v811 = vadd.f32 %v809, 0.0
  %v812 = vperm.slane %v42, 0
  %813 = vset.pattern.permute.xlu0 1
  %814 = vperm.xlu0 %813, %v795
  %v815 = vpop.permute.xlu0 %814
  %817 = vset.pattern.permute.xlu0 1
  %818 = vperm.xlu0 %817, %v796
  %v819 = vpop.permute.xlu0 %818
  %v821 = vmul.f32 %v812, %v815
  %v822 = vmul.f32 %v812, %v819
  %v823 = vadd.f32 %v810, %v821
  %v824 = vadd.f32 %v811, %v822
  %v825 = vadd.f32 %v793, %v823
  %v826 = vadd.f32 %v794, %v824
  %827 = vst [vmem:[%s9] sm:$0xff] %v825
  %828 = vst [vmem:[%s9 + $0x8] sm:$0xff] %v826
  // Predicated region
  $region38: #{_down_forward.1} parent=0 // pred_check
    _
  $region39: #{_down_forward.1} parent=0 // pred_check_branch
    %830 = sbr.rel (0) target = $region41
  $region40: #{_down_forward.1} parent=0 // pred_region
    _
  $region41: #{_down_forward.1} parent=0 // pred_fallthru
    _
  // Predicated region
  $region42: #{_down_forward.1} parent=0 // pred_check
    _
  $region43: #{_down_forward.1} parent=0 // pred_check_branch
    %832 = sbr.rel (0) target = $region45
  $region44: #{_down_forward.1} parent=0 // pred_region
    _
  $region45: #{_down_forward.1} parent=0 // pred_fallthru
    _

</llo_original>
